<compile_context>
chip_gen: v7x
topology: tpu7x:2x2x1
jax: 0.10.0
libtpu: 0.0.40
codegen_flags: <defaults>
</compile_context>

<pallas_src>
import math
import numpy as np
import jax
import jax.numpy as jnp
from jax.experimental import pallas as pl
from jax.experimental.pallas import tpu as pltpu

_PI = math.pi


# ----------------------------------------------------------------------------
# In-kernel math helpers (VPU-only: +,*,/ ,abs,min,max,where,floor).
# ----------------------------------------------------------------------------
def _atan_poly(t):
    # odd minimax polynomial for atan(t), |t| <= 1 (abs err ~1e-5)
    t2 = t * t
    p = jnp.float32(-0.0117212)
    p = p * t2 + jnp.float32(0.05265332)
    p = p * t2 + jnp.float32(-0.11643287)
    p = p * t2 + jnp.float32(0.19354346)
    p = p * t2 + jnp.float32(-0.33262348)
    p = p * t2 + jnp.float32(0.99997726)
    return p * t


def _atan2(y, x):
    """torch.angle semantics: atan2(imag, real), angle(0+0j) == 0."""
    ax = jnp.abs(x)
    ay = jnp.abs(y)
    hi = jnp.maximum(ax, ay)
    lo = jnp.minimum(ax, ay)
    t = lo / jnp.maximum(hi, jnp.float32(1e-30))
    a = _atan_poly(t)
    a = jnp.where(ay > ax, jnp.float32(0.5 * _PI) - a, a)
    a = jnp.where(x < 0.0, jnp.float32(_PI) - a, a)
    return jnp.where(y < 0.0, -a, a)


def _sincos(x):
    """sin/cos with floor-based range reduction (valid for any finite phase)."""
    two_pi = jnp.float32(2.0 * _PI)
    pi = jnp.float32(_PI)
    half_pi = jnp.float32(0.5 * _PI)
    k = jnp.floor(x * jnp.float32(1.0 / (2.0 * _PI)) + jnp.float32(0.5))
    x = x - k * two_pi                                  # -> [-pi, pi]
    flip = jnp.abs(x) > half_pi
    z = jnp.where(flip, jnp.where(x > 0.0, pi - x, -pi - x), x)
    z2 = z * z
    s = z * (1.0 + z2 * (-1.0 / 6.0 + z2 * (1.0 / 120.0
             + z2 * (-1.0 / 5040.0 + z2 * (1.0 / 362880.0)))))
    c = 1.0 + z2 * (-0.5 + z2 * (1.0 / 24.0 + z2 * (-1.0 / 720.0
             + z2 * (1.0 / 40320.0 - z2 * (1.0 / 3628800.0)))))
    c = jnp.where(flip, -c, c)
    return s, c


# ----------------------------------------------------------------------------
# Real-DFT matrices for torch.fft.rfft2 / irfft2 with norm='backward'.
# ----------------------------------------------------------------------------
def _dft_mats_np(H, W):
    Wf = W // 2 + 1
    ang_h = 2.0 * np.pi * (np.arange(H)[:, None] * np.arange(H)[None, :]) / H
    fhc = np.cos(ang_h)                                # (H, H), symmetric
    fhs = np.sin(ang_h)
    ang_f = 2.0 * np.pi * (np.arange(W)[:, None] * np.arange(Wf)[None, :]) / W
    fwc = np.cos(ang_f)                                # (W, Wf) forward rfft
    fws = np.sin(ang_f)
    ang_i = 2.0 * np.pi * (np.arange(Wf)[:, None] * np.arange(W)[None, :]) / W
    wgt = np.full((Wf, 1), 2.0)                        # Hermitian-mirror weights
    wgt[0, 0] = 1.0
    if W % 2 == 0:
        wgt[-1, 0] = 1.0
    iwc = wgt * np.cos(ang_i) / (H * W)                # (Wf, W): inverse, weights
    iws = wgt * np.sin(ang_i) / (H * W)                #   and 1/(H*W) folded in
    return fhc, fhs, fwc, fws, iwc, iws


# ----------------------------------------------------------------------------
# Fused Pallas kernel: lora_down -> rfft2 -> mag/pha branches -> irfft2 -> lora_up
# Working layout: rows = H, lanes = W*channels (lane-dense, no relayouts).
# ----------------------------------------------------------------------------
def _make_fused_kernel(H, Wf):
    inv_hwf = 1.0 / float(H * Wf)   # adaptive_avg_pool2d((1,1)) normalizer
    inv_wf = 1.0 / float(Wf)        # corrects lane-replicated softmax denominator

    def kernel(x_ref, kd_ref, kwc_ref, kws_ref, fhc_ref, fhs_ref,
               kmag_ref, bm_ref, kp1_ref, bp1_ref, kp2_ref, bp2_ref,
               gpool_ref, kiwc_ref, kiws_ref, ku_ref, o_ref):
        f32, bf16 = jnp.float32, jnp.bfloat16

        def mm(a, b):      # bf16 MXU matmul with f32 accumulation
            return jnp.dot(a.astype(bf16), b.astype(bf16),
                           preferred_element_type=f32)

        fhc = fhc_ref[...]
        fhs = fhs_ref[...]

        # lora_down (nn.Linear(E, R), no bias); channels interleave into lanes.
        x = x_ref[0]                                        # (H, W*E) f32
        d = mm(x, kd_ref[...])                              # (H, W*R)

        # rfft2: real DFT along W (right-mult by kron(fwc, I_R)), then along H.
        t1r = mm(d, kwc_ref[...])                           # (H, Wf*R)
        t1i = -mm(d, kws_ref[...])
        fr = mm(fhc, t1r) + mm(fhs, t1i)
        fi = mm(fhc, t1i) - mm(fhs, t1r)

        mag = jnp.sqrt(fr * fr + fi * fi)                   # torch.abs   (f32)
        pha = _atan2(fi, fr)                                # torch.angle (f32)

        # magnitude branch: 1x1 conv == block-diag kron(I_Wf, wm.T) MXU matmul.
        mag_out = mm(mag, kmag_ref[...]) + bm_ref[...]

        # adaptive_avg_pool2d((1,1)) of (mag_out - mag) + softmax over channels.
        # gpool = kron(ones(Wf,Wf), I_R) sums the Wf frequency blocks and
        # re-broadcasts per-channel values onto the interleaved lane layout.
        res = mag_out - mag
        rb = jnp.dot(res, gpool_ref[...], preferred_element_type=f32)
        pool = jnp.sum(rb, axis=0, keepdims=True) * inv_hwf  # (1, Wf*R)
        pmax = jnp.max(pool, axis=1, keepdims=True)
        pexp = jnp.exp(pool - pmax)
        pden = jnp.sum(pexp, axis=1, keepdims=True) * inv_wf
        soft = pexp / pden          # per-channel softmax, lane-replicated

        # phase branch: scale -> conv -> relu -> conv -> residual.
        pha1 = pha * soft
        h1 = jnp.maximum(mm(pha1, kp1_ref[...]) + bp1_ref[...], 0.0)
        h2 = mm(h1, kp2_ref[...]) + bp2_ref[...]
        pha_out = h2 + pha

        # recombine and irfft2 (s=(H, W), norm='backward').
        s, c = _sincos(pha_out)
        re = mag_out * c
        im = mag_out * s
        ar = mm(re, kiwc_ref[...]) - mm(im, kiws_ref[...])   # (H, W*R)
        br = mm(re, kiws_ref[...]) + mm(im, kiwc_ref[...])
        y = mm(fhc, ar) - mm(fhs, br)

        # lora_up (nn.Linear(R, E), no bias); lane-dense (H, W*E) output block.
        o_ref[0] = mm(y, ku_ref[...]).astype(o_ref.dtype)

    return kernel


def lora_fft_v2_forward(x, params):
    """x: (B, H, W, E) channels-last. Returns (B, H, W, E)."""
    B, H, W, E = x.shape
    R = params["wd"].shape[1]
    Wf = W // 2 + 1
    f32, bf16 = jnp.float32, jnp.bfloat16

    # Host-constant DFT matrices, Kronecker-expanded over the R channels
    # (parameter-independent -> baked into the executable as constants).
    fhc, fhs, fwc, fws, iwc, iws = _dft_mats_np(H, W)
    eye_r = np.eye(R, dtype=np.float32)
    kwc = jnp.asarray(np.kron(fwc, eye_r), bf16)        # (W*R, Wf*R)
    kws = jnp.asarray(np.kron(fws, eye_r), bf16)
    kiwc = jnp.asarray(np.kron(iwc, eye_r), bf16)       # (Wf*R, W*R)
    kiws = jnp.asarray(np.kron(iws, eye_r), bf16)
    fhc_b = jnp.asarray(fhc, bf16)                      # (H, H)
    fhs_b = jnp.asarray(fhs, bf16)
    gpool = jnp.asarray(np.kron(np.ones((Wf, Wf), np.float32), eye_r), f32)

    # Parameter-dependent block matrices (a few cheap XLA ops outside the kernel).
    eye_w = jnp.eye(W, dtype=f32)
    eye_wf = jnp.eye(Wf, dtype=f32)
    kd = jnp.kron(eye_w, params["wd"]).astype(bf16)          # (W*E, W*R) lora_down
    ku = jnp.kron(eye_w, params["wu"]).astype(bf16)          # (W*R, W*E) lora_up
    kmag = jnp.kron(eye_wf, params["wm"].T).astype(bf16)     # (Wf*R, Wf*R)
    kp1 = jnp.kron(eye_wf, params["wp1"].T).astype(bf16)
    kp2 = jnp.kron(eye_wf, params["wp2"].T).astype(bf16)
    bm_t = jnp.tile(params["bm"], Wf)[None, :].astype(f32)   # (1, Wf*R)
    bp1_t = jnp.tile(params["bp1"], Wf)[None, :].astype(f32)
    bp2_t = jnp.tile(params["bp2"], Wf)[None, :].astype(f32)

    # Lane-dense view: merge W into the lane axis (free reshape, no transpose).
    x2 = x.reshape(B, H, W * E)

    kernel = _make_fused_kernel(H, Wf)

    def _full(a):
        nd = a.ndim
        return pl.BlockSpec(a.shape, lambda b, _n=nd: (0,) * _n)

    out2 = pl.pallas_call(
        kernel,
        out_shape=jax.ShapeDtypeStruct((B, H, W * E), f32),
        grid=(B,),
        in_specs=[
            pl.BlockSpec((1, H, W * E), lambda b: (b, 0, 0)),
            _full(kd), _full(kwc), _full(kws), _full(fhc_b), _full(fhs_b),
            _full(kmag), _full(bm_t), _full(kp1), _full(bp1_t),
            _full(kp2), _full(bp2_t),
            _full(gpool), _full(kiwc), _full(kiws), _full(ku),
        ],
        out_specs=pl.BlockSpec((1, H, W * E), lambda b: (b, 0, 0)),
        compiler_params=pltpu.CompilerParams(
            dimension_semantics=("parallel",)),   # v7x megacore splits the batch
    )(x2, kd, kwc, kws, fhc_b, fhs_b, kmag, bm_t, kp1, bp1_t, kp2, bp2_t,
      gpool, kiwc, kiws, ku)

    return out2.reshape(B, H, W, E)


# ----------------------------------------------------------------------------
# Pure-JAX reference (same math, exact trig, f32, highest matmul precision).
# ----------------------------------------------------------------------------
def reference_forward(x, params):
    B, H, W, E = x.shape
    fhc, fhs, fwc, fws, iwc, iws = [jnp.asarray(m, jnp.float32)
                                    for m in _dft_mats_np(H, W)]
    hp = jax.lax.Precision.HIGHEST
    d = jnp.einsum("bhwe,er->bhwr", x, params["wd"], precision=hp)
    d = jnp.transpose(d, (0, 3, 1, 2))
    t1r = jnp.einsum("bchw,wk->bchk", d, fwc, precision=hp)
    t1i = -jnp.einsum("bchw,wk->bchk", d, fws, precision=hp)
    fr = (jnp.einsum("mh,bchk->bcmk", fhc, t1r, precision=hp) +
          jnp.einsum("mh,bchk->bcmk", fhs, t1i, precision=hp))
    fi = (jnp.einsum("mh,bchk->bcmk", fhc, t1i, precision=hp) -
          jnp.einsum("mh,bchk->bcmk", fhs, t1r, precision=hp))
    mag = jnp.sqrt(fr * fr + fi * fi)
    pha = jnp.arctan2(fi, fr)
    mag_out = jnp.einsum("oc,bchk->bohk", params["wm"], mag, precision=hp) \
        + params["bm"][None, :, None, None]
    pool = jnp.mean(mag_out - mag, axis=(2, 3), keepdims=True)
    pool = jax.nn.softmax(pool, axis=1)
    pha1 = pha * pool
    h1 = jnp.maximum(jnp.einsum("oc,bchk->bohk", params["wp1"], pha1, precision=hp)
                     + params["bp1"][None, :, None, None], 0.0)
    h2 = jnp.einsum("oc,bchk->bohk", params["wp2"], h1, precision=hp) \
        + params["bp2"][None, :, None, None]
    pha_out = h2 + pha
    re = mag_out * jnp.cos(pha_out)
    im = mag_out * jnp.sin(pha_out)
    ar = (jnp.einsum("bcmk,kw->bcmw", re, iwc, precision=hp) -
          jnp.einsum("bcmk,kw->bcmw", im, iws, precision=hp))
    br = (jnp.einsum("bcmk,kw->bcmw", re, iws, precision=hp) +
          jnp.einsum("bcmk,kw->bcmw", im, iwc, precision=hp))
    y = (jnp.einsum("am,bcmw->bcaw", fhc, ar, precision=hp) -
         jnp.einsum("am,bcmw->bcaw", fhs, br, precision=hp))
    y = jnp.transpose(y, (0, 2, 3, 1))
    return jnp.einsum("bhwr,re->bhwe", y, params["wu"], precision=hp)


if __name__ == "__main__":
    B, H, W, E, R = 2, 16, 16, 32, 8   # batch, spatial, embed, LoRA rank
    keys = jax.random.split(jax.random.PRNGKey(0), 9)
    bd = 1.0 / math.sqrt(E)            # kaiming_uniform(a=sqrt(5)) bound for lora_down
    params = {
        "wd": jax.random.uniform(keys[0], (E, R), jnp.float32, -bd, bd),   # lora_down.weight^T
        # torch zero-inits lora_up (output would be identically 0); use small
        # nonzero deterministic values so the kernel path is actually exercised.
        "wu": jax.random.uniform(keys[1], (R, E), jnp.float32, -0.1, 0.1), # lora_up.weight^T
        "wm": jax.random.uniform(keys[2], (R, R), jnp.float32, -0.25, 0.25),
        "bm": jax.random.uniform(keys[3], (R,), jnp.float32, -0.25, 0.25),
        "wp1": jax.random.uniform(keys[4], (R, R), jnp.float32, -0.2, 0.2),
        "bp1": jax.random.uniform(keys[5], (R,), jnp.float32, -0.2, 0.2),
        "wp2": jax.random.uniform(keys[6], (R, R), jnp.float32, -0.2, 0.2),
        "bp2": jax.random.uniform(keys[7], (R,), jnp.float32, -0.2, 0.2),
    }
    x = jax.random.normal(keys[8], (B, H, W, E), jnp.float32)

    out = jax.block_until_ready(jax.jit(lora_fft_v2_forward)(x, params))
    ref = jax.block_until_ready(reference_forward(x, params))

    assert out.shape == (B, H, W, E)
    assert bool(jnp.all(jnp.isfinite(out)))
    rel_err = float(jnp.max(jnp.abs(out - ref)) / (jnp.max(jnp.abs(ref)) + 1e-6))
    # bf16 MXU operands (per perf review) cost ~0.3-1% max-relative error vs the
    # exact-f32 reference; budget 2e-2.
    assert rel_err < 2e-2, f"kernel/reference mismatch: rel_err={rel_err}"
    print("KERNEL_OK")
</pallas_src>

<mosaic_0001>
module attributes {stable_mosaic.version = 11 : i64} {
  func.func @kernel(%arg0: i32, %arg1: memref<1x16x512xf32, #tpu.memory_space<vmem>>, %arg2: memref<512x128xbf16, #tpu.memory_space<vmem>>, %arg3: memref<128x72xbf16, #tpu.memory_space<vmem>>, %arg4: memref<128x72xbf16, #tpu.memory_space<vmem>>, %arg5: memref<16x16xbf16, #tpu.memory_space<vmem>>, %arg6: memref<16x16xbf16, #tpu.memory_space<vmem>>, %arg7: memref<72x72xbf16, #tpu.memory_space<vmem>>, %arg8: memref<1x72xf32, #tpu.memory_space<vmem>>, %arg9: memref<72x72xbf16, #tpu.memory_space<vmem>>, %arg10: memref<1x72xf32, #tpu.memory_space<vmem>>, %arg11: memref<72x72xbf16, #tpu.memory_space<vmem>>, %arg12: memref<1x72xf32, #tpu.memory_space<vmem>>, %arg13: memref<72x72xf32, #tpu.memory_space<vmem>>, %arg14: memref<72x128xbf16, #tpu.memory_space<vmem>>, %arg15: memref<72x128xbf16, #tpu.memory_space<vmem>>, %arg16: memref<128x512xbf16, #tpu.memory_space<vmem>>, %arg17: memref<1x16x512xf32, #tpu.memory_space<vmem>>) attributes {dimension_semantics = [#tpu.dimension_semantics<parallel>], iteration_bounds = array<i64: 2>, scalar_prefetch = 0 : i64, scratch_operands = 0 : i64, tpu.core_type = #tpu.core_type<tc>, window_params = [{transform_indices = @transform_0, window_bounds = array<i64: 1, 16, 512>}, {pipeline_mode = #tpu.pipeline_mode<synchronous>, transform_indices = @transform_1, window_bounds = array<i64: 512, 128>}, {pipeline_mode = #tpu.pipeline_mode<synchronous>, transform_indices = @transform_2, window_bounds = array<i64: 128, 72>}, {pipeline_mode = #tpu.pipeline_mode<synchronous>, transform_indices = @transform_3, window_bounds = array<i64: 128, 72>}, {pipeline_mode = #tpu.pipeline_mode<synchronous>, transform_indices = @transform_4, window_bounds = array<i64: 16, 16>}, {pipeline_mode = #tpu.pipeline_mode<synchronous>, transform_indices = @transform_5, window_bounds = array<i64: 16, 16>}, {pipeline_mode = #tpu.pipeline_mode<synchronous>, transform_indices = @transform_6, window_bounds = array<i64: 72, 72>}, {pipeline_mode = #tpu.pipeline_mode<synchronous>, transform_indices = @transform_7, window_bounds = array<i64: 1, 72>}, {pipeline_mode = #tpu.pipeline_mode<synchronous>, transform_indices = @transform_8, window_bounds = array<i64: 72, 72>}, {pipeline_mode = #tpu.pipeline_mode<synchronous>, transform_indices = @transform_9, window_bounds = array<i64: 1, 72>}, {pipeline_mode = #tpu.pipeline_mode<synchronous>, transform_indices = @transform_10, window_bounds = array<i64: 72, 72>}, {pipeline_mode = #tpu.pipeline_mode<synchronous>, transform_indices = @transform_11, window_bounds = array<i64: 1, 72>}, {pipeline_mode = #tpu.pipeline_mode<synchronous>, transform_indices = @transform_12, window_bounds = array<i64: 72, 72>}, {pipeline_mode = #tpu.pipeline_mode<synchronous>, transform_indices = @transform_13, window_bounds = array<i64: 72, 128>}, {pipeline_mode = #tpu.pipeline_mode<synchronous>, transform_indices = @transform_14, window_bounds = array<i64: 72, 128>}, {pipeline_mode = #tpu.pipeline_mode<synchronous>, transform_indices = @transform_15, window_bounds = array<i64: 128, 512>}, {transform_indices = @transform_16, window_bounds = array<i64: 1, 16, 512>}]} {
    %c0 = arith.constant 0 : index
    %c0_0 = arith.constant 0 : index
    %0 = vector.load %arg5[%c0, %c0_0] : memref<16x16xbf16, #tpu.memory_space<vmem>>, vector<16x16xbf16>
    %c0_1 = arith.constant 0 : index
    %c0_2 = arith.constant 0 : index
    %1 = vector.load %arg6[%c0_1, %c0_2] : memref<16x16xbf16, #tpu.memory_space<vmem>>, vector<16x16xbf16>
    %c0_3 = arith.constant 0 : index
    %c0_4 = arith.constant 0 : index
    %c0_5 = arith.constant 0 : index
    %2 = vector.load %arg1[%c0_3, %c0_4, %c0_5] : memref<1x16x512xf32, #tpu.memory_space<vmem>>, vector<1x16x512xf32>
    %3 = vector.shape_cast %2 : vector<1x16x512xf32> to vector<16x512xf32>
    %c0_6 = arith.constant 0 : index
    %c0_7 = arith.constant 0 : index
    %4 = vector.load %arg2[%c0_6, %c0_7] : memref<512x128xbf16, #tpu.memory_space<vmem>>, vector<512x128xbf16>
    %5 = arith.truncf %3 : vector<16x512xf32> to vector<16x512xbf16>
    %cst = arith.constant dense<0.000000e+00> : vector<16x128xf32>
    %6 = tpu.matmul %5, %4, %cst {dimension_numbers = #tpu.dot_dimension_numbers<[1], [0], [0], [1], [0, 0, 1, 1], [], []>} : vector<16x512xbf16>, vector<512x128xbf16>, vector<16x128xf32> -> vector<16x128xf32>
    %c0_8 = arith.constant 0 : index
    %c0_9 = arith.constant 0 : index
    %7 = vector.load %arg3[%c0_8, %c0_9] : memref<128x72xbf16, #tpu.memory_space<vmem>>, vector<128x72xbf16>
    %8 = arith.truncf %6 : vector<16x128xf32> to vector<16x128xbf16>
    %cst_10 = arith.constant dense<0.000000e+00> : vector<16x72xf32>
    %9 = tpu.matmul %8, %7, %cst_10 {dimension_numbers = #tpu.dot_dimension_numbers<[1], [0], [0], [1], [0, 0, 1, 1], [], []>} : vector<16x128xbf16>, vector<128x72xbf16>, vector<16x72xf32> -> vector<16x72xf32>
    %c0_11 = arith.constant 0 : index
    %c0_12 = arith.constant 0 : index
    %10 = vector.load %arg4[%c0_11, %c0_12] : memref<128x72xbf16, #tpu.memory_space<vmem>>, vector<128x72xbf16>
    %11 = arith.truncf %6 : vector<16x128xf32> to vector<16x128xbf16>
    %cst_13 = arith.constant dense<0.000000e+00> : vector<16x72xf32>
    %12 = tpu.matmul %11, %10, %cst_13 {dimension_numbers = #tpu.dot_dimension_numbers<[1], [0], [0], [1], [0, 0, 1, 1], [], []>} : vector<16x128xbf16>, vector<128x72xbf16>, vector<16x72xf32> -> vector<16x72xf32>
    %cst_14 = arith.constant 0.000000e+00 : f32
    %13 = vector.broadcast %cst_14 : f32 to vector<16x72xf32>
    %14 = arith.subf %13, %12 : vector<16x72xf32>
    %15 = arith.truncf %9 : vector<16x72xf32> to vector<16x72xbf16>
    %cst_15 = arith.constant dense<0.000000e+00> : vector<16x72xf32>
    %16 = tpu.matmul %0, %15, %cst_15 {dimension_numbers = #tpu.dot_dimension_numbers<[1], [0], [0], [1], [0, 0, 1, 1], [], []>} : vector<16x16xbf16>, vector<16x72xbf16>, vector<16x72xf32> -> vector<16x72xf32>
    %17 = arith.truncf %14 : vector<16x72xf32> to vector<16x72xbf16>
    %cst_16 = arith.constant dense<0.000000e+00> : vector<16x72xf32>
    %18 = tpu.matmul %1, %17, %cst_16 {dimension_numbers = #tpu.dot_dimension_numbers<[1], [0], [0], [1], [0, 0, 1, 1], [], []>} : vector<16x16xbf16>, vector<16x72xbf16>, vector<16x72xf32> -> vector<16x72xf32>
    %19 = arith.addf %16, %18 : vector<16x72xf32>
    %20 = arith.truncf %14 : vector<16x72xf32> to vector<16x72xbf16>
    %cst_17 = arith.constant dense<0.000000e+00> : vector<16x72xf32>
    %21 = tpu.matmul %0, %20, %cst_17 {dimension_numbers = #tpu.dot_dimension_numbers<[1], [0], [0], [1], [0, 0, 1, 1], [], []>} : vector<16x16xbf16>, vector<16x72xbf16>, vector<16x72xf32> -> vector<16x72xf32>
    %22 = arith.truncf %9 : vector<16x72xf32> to vector<16x72xbf16>
    %cst_18 = arith.constant dense<0.000000e+00> : vector<16x72xf32>
    %23 = tpu.matmul %1, %22, %cst_18 {dimension_numbers = #tpu.dot_dimension_numbers<[1], [0], [0], [1], [0, 0, 1, 1], [], []>} : vector<16x16xbf16>, vector<16x72xbf16>, vector<16x72xf32> -> vector<16x72xf32>
    %24 = arith.subf %21, %23 : vector<16x72xf32>
    %25 = arith.mulf %19, %19 : vector<16x72xf32>
    %26 = arith.mulf %24, %24 : vector<16x72xf32>
    %27 = arith.addf %25, %26 : vector<16x72xf32>
    %28 = math.sqrt %27 : vector<16x72xf32>
    %29 = math.absf %19 : vector<16x72xf32>
    %30 = math.absf %24 : vector<16x72xf32>
    %31 = arith.maximumf %29, %30 : vector<16x72xf32>
    %32 = arith.minimumf %29, %30 : vector<16x72xf32>
    %cst_19 = arith.constant 1.000000e-30 : f32
    %33 = vector.broadcast %cst_19 : f32 to vector<16x72xf32>
    %34 = arith.maximumf %31, %33 : vector<16x72xf32>
    %35 = arith.divf %32, %34 : vector<16x72xf32>
    %36 = arith.mulf %35, %35 : vector<16x72xf32>
    %cst_20 = arith.constant -1.172120e-02 : f32
    %37 = vector.broadcast %cst_20 : f32 to vector<16x72xf32>
    %38 = arith.mulf %37, %36 : vector<16x72xf32>
    %cst_21 = arith.constant 0.0526533201 : f32
    %39 = vector.broadcast %cst_21 : f32 to vector<16x72xf32>
    %40 = arith.addf %38, %39 : vector<16x72xf32>
    %41 = arith.mulf %40, %36 : vector<16x72xf32>
    %cst_22 = arith.constant -0.116432868 : f32
    %42 = vector.broadcast %cst_22 : f32 to vector<16x72xf32>
    %43 = arith.addf %41, %42 : vector<16x72xf32>
    %44 = arith.mulf %43, %36 : vector<16x72xf32>
    %cst_23 = arith.constant 0.193543464 : f32
    %45 = vector.broadcast %cst_23 : f32 to vector<16x72xf32>
    %46 = arith.addf %44, %45 : vector<16x72xf32>
    %47 = arith.mulf %46, %36 : vector<16x72xf32>
    %cst_24 = arith.constant -0.332623482 : f32
    %48 = vector.broadcast %cst_24 : f32 to vector<16x72xf32>
    %49 = arith.addf %47, %48 : vector<16x72xf32>
    %50 = arith.mulf %49, %36 : vector<16x72xf32>
    %cst_25 = arith.constant 0.999977231 : f32
    %51 = vector.broadcast %cst_25 : f32 to vector<16x72xf32>
    %52 = arith.addf %50, %51 : vector<16x72xf32>
    %53 = arith.mulf %52, %35 : vector<16x72xf32>
    %54 = arith.cmpf ogt, %30, %29 : vector<16x72xf32>
    %cst_26 = arith.constant 1.57079637 : f32
    %55 = vector.broadcast %cst_26 : f32 to vector<16x72xf32>
    %56 = arith.subf %55, %53 : vector<16x72xf32>
    %57 = arith.select %54, %56, %53 : vector<16x72xi1>, vector<16x72xf32>
    %cst_27 = arith.constant 0.000000e+00 : f32
    %58 = vector.broadcast %cst_27 : f32 to vector<16x72xf32>
    %59 = arith.cmpf olt, %19, %58 : vector<16x72xf32>
    %cst_28 = arith.constant 3.14159274 : f32
    %60 = vector.broadcast %cst_28 : f32 to vector<16x72xf32>
    %61 = arith.subf %60, %57 : vector<16x72xf32>
    %62 = arith.select %59, %61, %57 : vector<16x72xi1>, vector<16x72xf32>
    %cst_29 = arith.constant 0.000000e+00 : f32
    %63 = vector.broadcast %cst_29 : f32 to vector<16x72xf32>
    %64 = arith.cmpf olt, %24, %63 : vector<16x72xf32>
    %cst_30 = arith.constant 0.000000e+00 : f32
    %65 = vector.broadcast %cst_30 : f32 to vector<16x72xf32>
    %66 = arith.subf %65, %62 : vector<16x72xf32>
    %67 = arith.select %64, %66, %62 : vector<16x72xi1>, vector<16x72xf32>
    %c0_31 = arith.constant 0 : index
    %c0_32 = arith.constant 0 : index
    %68 = vector.load %arg7[%c0_31, %c0_32] : memref<72x72xbf16, #tpu.memory_space<vmem>>, vector<72x72xbf16>
    %69 = arith.truncf %28 : vector<16x72xf32> to vector<16x72xbf16>
    %cst_33 = arith.constant dense<0.000000e+00> : vector<16x72xf32>
    %70 = tpu.matmul %69, %68, %cst_33 {dimension_numbers = #tpu.dot_dimension_numbers<[1], [0], [0], [1], [0, 0, 1, 1], [], []>} : vector<16x72xbf16>, vector<72x72xbf16>, vector<16x72xf32> -> vector<16x72xf32>
    %c0_34 = arith.constant 0 : index
    %c0_35 = arith.constant 0 : index
    %71 = vector.load %arg8[%c0_34, %c0_35] : memref<1x72xf32, #tpu.memory_space<vmem>>, vector<1x72xf32>
    %72 = vector.broadcast %71 : vector<1x72xf32> to vector<16x72xf32>
    %73 = arith.addf %70, %72 : vector<16x72xf32>
    %74 = arith.subf %73, %28 : vector<16x72xf32>
    %c0_36 = arith.constant 0 : index
    %c0_37 = arith.constant 0 : index
    %75 = vector.load %arg13[%c0_36, %c0_37] : memref<72x72xf32, #tpu.memory_space<vmem>>, vector<72x72xf32>
    %cst_38 = arith.constant dense<0.000000e+00> : vector<16x72xf32>
    %76 = tpu.matmul %74, %75, %cst_38 {dimension_numbers = #tpu.dot_dimension_numbers<[1], [0], [0], [1], [0, 0, 1, 1], [], []>} : vector<16x72xf32>, vector<72x72xf32>, vector<16x72xf32> -> vector<16x72xf32>
    %cst_39 = arith.constant dense<0.000000e+00> : vector<72xf32>
    %77 = vector.multi_reduction <add>, %76, %cst_39 [0] : vector<16x72xf32> to vector<72xf32>
    %78 = vector.shape_cast %77 : vector<72xf32> to vector<1x72xf32>
    %cst_40 = arith.constant 0.0069444445 : f32
    %79 = vector.broadcast %cst_40 : f32 to vector<1x72xf32>
    %80 = arith.mulf %78, %79 : vector<1x72xf32>
    %cst_41 = arith.constant dense<0xFF800000> : vector<1xf32>
    %81 = vector.multi_reduction <maximumf>, %80, %cst_41 [1] : vector<1x72xf32> to vector<1xf32>
    %82 = vector.shape_cast %81 : vector<1xf32> to vector<1x1xf32>
    %83 = vector.broadcast %82 : vector<1x1xf32> to vector<1x72xf32>
    %84 = arith.subf %80, %83 : vector<1x72xf32>
    %85 = math.exp %84 : vector<1x72xf32>
    %cst_42 = arith.constant dense<0.000000e+00> : vector<1xf32>
    %86 = vector.multi_reduction <add>, %85, %cst_42 [1] : vector<1x72xf32> to vector<1xf32>
    %87 = vector.shape_cast %86 : vector<1xf32> to vector<1x1xf32>
    %cst_43 = arith.constant 0.111111112 : f32
    %88 = vector.broadcast %cst_43 : f32 to vector<1x1xf32>
    %89 = arith.mulf %87, %88 : vector<1x1xf32>
    %90 = vector.broadcast %89 : vector<1x1xf32> to vector<1x72xf32>
    %91 = arith.divf %85, %90 : vector<1x72xf32>
    %92 = vector.broadcast %91 : vector<1x72xf32> to vector<16x72xf32>
    %93 = arith.mulf %67, %92 : vector<16x72xf32>
    %c0_44 = arith.constant 0 : index
    %c0_45 = arith.constant 0 : index
    %94 = vector.load %arg9[%c0_44, %c0_45] : memref<72x72xbf16, #tpu.memory_space<vmem>>, vector<72x72xbf16>
    %95 = arith.truncf %93 : vector<16x72xf32> to vector<16x72xbf16>
    %cst_46 = arith.constant dense<0.000000e+00> : vector<16x72xf32>
    %96 = tpu.matmul %95, %94, %cst_46 {dimension_numbers = #tpu.dot_dimension_numbers<[1], [0], [0], [1], [0, 0, 1, 1], [], []>} : vector<16x72xbf16>, vector<72x72xbf16>, vector<16x72xf32> -> vector<16x72xf32>
    %c0_47 = arith.constant 0 : index
    %c0_48 = arith.constant 0 : index
    %97 = vector.load %arg10[%c0_47, %c0_48] : memref<1x72xf32, #tpu.memory_space<vmem>>, vector<1x72xf32>
    %98 = vector.broadcast %97 : vector<1x72xf32> to vector<16x72xf32>
    %99 = arith.addf %96, %98 : vector<16x72xf32>
    %cst_49 = arith.constant 0.000000e+00 : f32
    %100 = vector.broadcast %cst_49 : f32 to vector<16x72xf32>
    %101 = arith.maximumf %99, %100 : vector<16x72xf32>
    %c0_50 = arith.constant 0 : index
    %c0_51 = arith.constant 0 : index
    %102 = vector.load %arg11[%c0_50, %c0_51] : memref<72x72xbf16, #tpu.memory_space<vmem>>, vector<72x72xbf16>
    %103 = arith.truncf %101 : vector<16x72xf32> to vector<16x72xbf16>
    %cst_52 = arith.constant dense<0.000000e+00> : vector<16x72xf32>
    %104 = tpu.matmul %103, %102, %cst_52 {dimension_numbers = #tpu.dot_dimension_numbers<[1], [0], [0], [1], [0, 0, 1, 1], [], []>} : vector<16x72xbf16>, vector<72x72xbf16>, vector<16x72xf32> -> vector<16x72xf32>
    %c0_53 = arith.constant 0 : index
    %c0_54 = arith.constant 0 : index
    %105 = vector.load %arg12[%c0_53, %c0_54] : memref<1x72xf32, #tpu.memory_space<vmem>>, vector<1x72xf32>
    %106 = vector.broadcast %105 : vector<1x72xf32> to vector<16x72xf32>
    %107 = arith.addf %104, %106 : vector<16x72xf32>
    %108 = arith.addf %107, %67 : vector<16x72xf32>
    %cst_55 = arith.constant 0.159154937 : f32
    %109 = vector.broadcast %cst_55 : f32 to vector<16x72xf32>
    %110 = arith.mulf %108, %109 : vector<16x72xf32>
    %cst_56 = arith.constant 5.000000e-01 : f32
    %111 = vector.broadcast %cst_56 : f32 to vector<16x72xf32>
    %112 = arith.addf %110, %111 : vector<16x72xf32>
    %113 = math.floor %112 : vector<16x72xf32>
    %cst_57 = arith.constant 6.28318548 : f32
    %114 = vector.broadcast %cst_57 : f32 to vector<16x72xf32>
    %115 = arith.mulf %113, %114 : vector<16x72xf32>
    %116 = arith.subf %108, %115 : vector<16x72xf32>
    %117 = math.absf %116 : vector<16x72xf32>
    %cst_58 = arith.constant 1.57079637 : f32
    %118 = vector.broadcast %cst_58 : f32 to vector<16x72xf32>
    %119 = arith.cmpf ogt, %117, %118 : vector<16x72xf32>
    %cst_59 = arith.constant 0.000000e+00 : f32
    %120 = vector.broadcast %cst_59 : f32 to vector<16x72xf32>
    %121 = arith.cmpf ogt, %116, %120 : vector<16x72xf32>
    %cst_60 = arith.constant 3.14159274 : f32
    %122 = vector.broadcast %cst_60 : f32 to vector<16x72xf32>
    %123 = arith.subf %122, %116 : vector<16x72xf32>
    %cst_61 = arith.constant 0.000000e+00 : f32
    %cst_62 = arith.constant 3.14159274 : f32
    %124 = arith.subf %cst_61, %cst_62 : f32
    %125 = vector.broadcast %124 : f32 to vector<16x72xf32>
    %126 = arith.subf %125, %116 : vector<16x72xf32>
    %127 = arith.select %121, %123, %126 : vector<16x72xi1>, vector<16x72xf32>
    %128 = arith.select %119, %127, %116 : vector<16x72xi1>, vector<16x72xf32>
    %129 = arith.mulf %128, %128 : vector<16x72xf32>
    %cst_63 = arith.constant 2.75573188E-6 : f32
    %130 = vector.broadcast %cst_63 : f32 to vector<16x72xf32>
    %131 = arith.mulf %129, %130 : vector<16x72xf32>
    %cst_64 = arith.constant -1.98412701E-4 : f32
    %132 = vector.broadcast %cst_64 : f32 to vector<16x72xf32>
    %133 = arith.addf %132, %131 : vector<16x72xf32>
    %134 = arith.mulf %129, %133 : vector<16x72xf32>
    %cst_65 = arith.constant 0.00833333377 : f32
    %135 = vector.broadcast %cst_65 : f32 to vector<16x72xf32>
    %136 = arith.addf %135, %134 : vector<16x72xf32>
    %137 = arith.mulf %129, %136 : vector<16x72xf32>
    %cst_66 = arith.constant -0.166666672 : f32
    %138 = vector.broadcast %cst_66 : f32 to vector<16x72xf32>
    %139 = arith.addf %138, %137 : vector<16x72xf32>
    %140 = arith.mulf %129, %139 : vector<16x72xf32>
    %cst_67 = arith.constant 1.000000e+00 : f32
    %141 = vector.broadcast %cst_67 : f32 to vector<16x72xf32>
    %142 = arith.addf %141, %140 : vector<16x72xf32>
    %143 = arith.mulf %128, %142 : vector<16x72xf32>
    %cst_68 = arith.constant 2.755732E-7 : f32
    %144 = vector.broadcast %cst_68 : f32 to vector<16x72xf32>
    %145 = arith.mulf %129, %144 : vector<16x72xf32>
    %cst_69 = arith.constant 2.48015876E-5 : f32
    %146 = vector.broadcast %cst_69 : f32 to vector<16x72xf32>
    %147 = arith.subf %146, %145 : vector<16x72xf32>
    %148 = arith.mulf %129, %147 : vector<16x72xf32>
    %cst_70 = arith.constant -0.00138888892 : f32
    %149 = vector.broadcast %cst_70 : f32 to vector<16x72xf32>
    %150 = arith.addf %149, %148 : vector<16x72xf32>
    %151 = arith.mulf %129, %150 : vector<16x72xf32>
    %cst_71 = arith.constant 0.0416666679 : f32
    %152 = vector.broadcast %cst_71 : f32 to vector<16x72xf32>
    %153 = arith.addf %152, %151 : vector<16x72xf32>
    %154 = arith.mulf %129, %153 : vector<16x72xf32>
    %cst_72 = arith.constant -5.000000e-01 : f32
    %155 = vector.broadcast %cst_72 : f32 to vector<16x72xf32>
    %156 = arith.addf %155, %154 : vector<16x72xf32>
    %157 = arith.mulf %129, %156 : vector<16x72xf32>
    %cst_73 = arith.constant 1.000000e+00 : f32
    %158 = vector.broadcast %cst_73 : f32 to vector<16x72xf32>
    %159 = arith.addf %158, %157 : vector<16x72xf32>
    %cst_74 = arith.constant 0.000000e+00 : f32
    %160 = vector.broadcast %cst_74 : f32 to vector<16x72xf32>
    %161 = arith.subf %160, %159 : vector<16x72xf32>
    %162 = arith.select %119, %161, %159 : vector<16x72xi1>, vector<16x72xf32>
    %163 = arith.mulf %73, %162 : vector<16x72xf32>
    %164 = arith.mulf %73, %143 : vector<16x72xf32>
    %c0_75 = arith.constant 0 : index
    %c0_76 = arith.constant 0 : index
    %165 = vector.load %arg14[%c0_75, %c0_76] : memref<72x128xbf16, #tpu.memory_space<vmem>>, vector<72x128xbf16>
    %166 = arith.truncf %163 : vector<16x72xf32> to vector<16x72xbf16>
    %cst_77 = arith.constant dense<0.000000e+00> : vector<16x128xf32>
    %167 = tpu.matmul %166, %165, %cst_77 {dimension_numbers = #tpu.dot_dimension_numbers<[1], [0], [0], [1], [0, 0, 1, 1], [], []>} : vector<16x72xbf16>, vector<72x128xbf16>, vector<16x128xf32> -> vector<16x128xf32>
    %c0_78 = arith.constant 0 : index
    %c0_79 = arith.constant 0 : index
    %168 = vector.load %arg15[%c0_78, %c0_79] : memref<72x128xbf16, #tpu.memory_space<vmem>>, vector<72x128xbf16>
    %169 = arith.truncf %164 : vector<16x72xf32> to vector<16x72xbf16>
    %cst_80 = arith.constant dense<0.000000e+00> : vector<16x128xf32>
    %170 = tpu.matmul %169, %168, %cst_80 {dimension_numbers = #tpu.dot_dimension_numbers<[1], [0], [0], [1], [0, 0, 1, 1], [], []>} : vector<16x72xbf16>, vector<72x128xbf16>, vector<16x128xf32> -> vector<16x128xf32>
    %171 = arith.subf %167, %170 : vector<16x128xf32>
    %c0_81 = arith.constant 0 : index
    %c0_82 = arith.constant 0 : index
    %172 = vector.load %arg15[%c0_81, %c0_82] : memref<72x128xbf16, #tpu.memory_space<vmem>>, vector<72x128xbf16>
    %173 = arith.truncf %163 : vector<16x72xf32> to vector<16x72xbf16>
    %cst_83 = arith.constant dense<0.000000e+00> : vector<16x128xf32>
    %174 = tpu.matmul %173, %172, %cst_83 {dimension_numbers = #tpu.dot_dimension_numbers<[1], [0], [0], [1], [0, 0, 1, 1], [], []>} : vector<16x72xbf16>, vector<72x128xbf16>, vector<16x128xf32> -> vector<16x128xf32>
    %c0_84 = arith.constant 0 : index
    %c0_85 = arith.constant 0 : index
    %175 = vector.load %arg14[%c0_84, %c0_85] : memref<72x128xbf16, #tpu.memory_space<vmem>>, vector<72x128xbf16>
    %176 = arith.truncf %164 : vector<16x72xf32> to vector<16x72xbf16>
    %cst_86 = arith.constant dense<0.000000e+00> : vector<16x128xf32>
    %177 = tpu.matmul %176, %175, %cst_86 {dimension_numbers = #tpu.dot_dimension_numbers<[1], [0], [0], [1], [0, 0, 1, 1], [], []>} : vector<16x72xbf16>, vector<72x128xbf16>, vector<16x128xf32> -> vector<16x128xf32>
    %178 = arith.addf %174, %177 : vector<16x128xf32>
    %179 = arith.truncf %171 : vector<16x128xf32> to vector<16x128xbf16>
    %cst_87 = arith.constant dense<0.000000e+00> : vector<16x128xf32>
    %180 = tpu.matmul %0, %179, %cst_87 {dimension_numbers = #tpu.dot_dimension_numbers<[1], [0], [0], [1], [0, 0, 1, 1], [], []>} : vector<16x16xbf16>, vector<16x128xbf16>, vector<16x128xf32> -> vector<16x128xf32>
    %181 = arith.truncf %178 : vector<16x128xf32> to vector<16x128xbf16>
    %cst_88 = arith.constant dense<0.000000e+00> : vector<16x128xf32>
    %182 = tpu.matmul %1, %181, %cst_88 {dimension_numbers = #tpu.dot_dimension_numbers<[1], [0], [0], [1], [0, 0, 1, 1], [], []>} : vector<16x16xbf16>, vector<16x128xbf16>, vector<16x128xf32> -> vector<16x128xf32>
    %183 = arith.subf %180, %182 : vector<16x128xf32>
    %c0_89 = arith.constant 0 : index
    %c0_90 = arith.constant 0 : index
    %184 = vector.load %arg16[%c0_89, %c0_90] : memref<128x512xbf16, #tpu.memory_space<vmem>>, vector<128x512xbf16>
    %185 = arith.truncf %183 : vector<16x128xf32> to vector<16x128xbf16>
    %cst_91 = arith.constant dense<0.000000e+00> : vector<16x512xf32>
    %186 = tpu.matmul %185, %184, %cst_91 {dimension_numbers = #tpu.dot_dimension_numbers<[1], [0], [0], [1], [0, 0, 1, 1], [], []>} : vector<16x128xbf16>, vector<128x512xbf16>, vector<16x512xf32> -> vector<16x512xf32>
    %c0_92 = arith.constant 0 : index
    %c0_93 = arith.constant 0 : index
    %c0_94 = arith.constant 0 : index
    %187 = vector.load %arg17[%c0_92, %c0_93, %c0_94] : memref<1x16x512xf32, #tpu.memory_space<vmem>>, vector<1x16x512xf32>
    %188 = vector.shape_cast %187 : vector<1x16x512xf32> to vector<16x512xf32>
    %189 = vector.shape_cast %186 : vector<16x512xf32> to vector<1x16x512xf32>
    tpu.vector_store %arg17[%c0_92, %c0_93, %c0_94], %189 {strides = array<i32>} : memref<1x16x512xf32, #tpu.memory_space<vmem>>, vector<1x16x512xf32>,
    return
  }
  func.func @transform_0(%arg0: i32) -> (i32, i32, i32) {
    %c0_i32 = arith.constant 0 : i32
    %c0_i32_0 = arith.constant 0 : i32
    %c0_i32_1 = arith.constant 0 : i32
    return %arg0, %c0_i32, %c0_i32_0 : i32, i32, i32
  }
  func.func @transform_1(%arg0: i32) -> (i32, i32) {
    %c0_i32 = arith.constant 0 : i32
    %c0_i32_0 = arith.constant 0 : i32
    %c0_i32_1 = arith.constant 0 : i32
    return %c0_i32, %c0_i32_0 : i32, i32
  }
  func.func @transform_2(%arg0: i32) -> (i32, i32) {
    %c0_i32 = arith.constant 0 : i32
    %c0_i32_0 = arith.constant 0 : i32
    %c0_i32_1 = arith.constant 0 : i32
    return %c0_i32, %c0_i32_0 : i32, i32
  }
  func.func @transform_3(%arg0: i32) -> (i32, i32) {
    %c0_i32 = arith.constant 0 : i32
    %c0_i32_0 = arith.constant 0 : i32
    %c0_i32_1 = arith.constant 0 : i32
    return %c0_i32, %c0_i32_0 : i32, i32
  }
  func.func @transform_4(%arg0: i32) -> (i32, i32) {
    %c0_i32 = arith.constant 0 : i32
    %c0_i32_0 = arith.constant 0 : i32
    %c0_i32_1 = arith.constant 0 : i32
    return %c0_i32, %c0_i32_0 : i32, i32
  }
  func.func @transform_5(%arg0: i32) -> (i32, i32) {
    %c0_i32 = arith.constant 0 : i32
    %c0_i32_0 = arith.constant 0 : i32
    %c0_i32_1 = arith.constant 0 : i32
    return %c0_i32, %c0_i32_0 : i32, i32
  }
  func.func @transform_6(%arg0: i32) -> (i32, i32) {
    %c0_i32 = arith.constant 0 : i32
    %c0_i32_0 = arith.constant 0 : i32
    %c0_i32_1 = arith.constant 0 : i32
    return %c0_i32, %c0_i32_0 : i32, i32
  }
  func.func @transform_7(%arg0: i32) -> (i32, i32) {
    %c0_i32 = arith.constant 0 : i32
    %c0_i32_0 = arith.constant 0 : i32
    %c0_i32_1 = arith.constant 0 : i32
    return %c0_i32, %c0_i32_0 : i32, i32
  }
  func.func @transform_8(%arg0: i32) -> (i32, i32) {
    %c0_i32 = arith.constant 0 : i32
    %c0_i32_0 = arith.constant 0 : i32
    %c0_i32_1 = arith.constant 0 : i32
    return %c0_i32, %c0_i32_0 : i32, i32
  }
  func.func @transform_9(%arg0: i32) -> (i32, i32) {
    %c0_i32 = arith.constant 0 : i32
    %c0_i32_0 = arith.constant 0 : i32
    %c0_i32_1 = arith.constant 0 : i32
    return %c0_i32, %c0_i32_0 : i32, i32
  }
  func.func @transform_10(%arg0: i32) -> (i32, i32) {
    %c0_i32 = arith.constant 0 : i32
    %c0_i32_0 = arith.constant 0 : i32
    %c0_i32_1 = arith.constant 0 : i32
    return %c0_i32, %c0_i32_0 : i32, i32
  }
  func.func @transform_11(%arg0: i32) -> (i32, i32) {
    %c0_i32 = arith.constant 0 : i32
    %c0_i32_0 = arith.constant 0 : i32
    %c0_i32_1 = arith.constant 0 : i32
    return %c0_i32, %c0_i32_0 : i32, i32
  }
  func.func @transform_12(%arg0: i32) -> (i32, i32) {
    %c0_i32 = arith.constant 0 : i32
    %c0_i32_0 = arith.constant 0 : i32
    %c0_i32_1 = arith.constant 0 : i32
    return %c0_i32, %c0_i32_0 : i32, i32
  }
  func.func @transform_13(%arg0: i32) -> (i32, i32) {
    %c0_i32 = arith.constant 0 : i32
    %c0_i32_0 = arith.constant 0 : i32
    %c0_i32_1 = arith.constant 0 : i32
    return %c0_i32, %c0_i32_0 : i32, i32
  }
  func.func @transform_14(%arg0: i32) -> (i32, i32) {
    %c0_i32 = arith.constant 0 : i32
    %c0_i32_0 = arith.constant 0 : i32
    %c0_i32_1 = arith.constant 0 : i32
    return %c0_i32, %c0_i32_0 : i32, i32
  }
  func.func @transform_15(%arg0: i32) -> (i32, i32) {
    %c0_i32 = arith.constant 0 : i32
    %c0_i32_0 = arith.constant 0 : i32
    %c0_i32_1 = arith.constant 0 : i32
    return %c0_i32, %c0_i32_0 : i32, i32
  }
  func.func @transform_16(%arg0: i32) -> (i32, i32, i32) {
    %c0_i32 = arith.constant 0 : i32
    %c0_i32_0 = arith.constant 0 : i32
    %c0_i32_1 = arith.constant 0 : i32
    return %arg0, %c0_i32, %c0_i32_0 : i32, i32, i32
  }
}

</mosaic_0001>

<llo_original>
// kernel: tile.18
$region0: #{tile.18}
  #allocation0 [shape = 's32[1]{0}', space=sflag, size = 0x4, scoped, tag = 'scoped memory for tile.18']
  %s0 = inlined_call_operand.vmem [shape: f32[8], index: 0, kind: input, shape index: {}]
  %s1 = inlined_call_operand.vmem [shape: f32[9,8], index: 1, kind: output, shape index: {}]
  // Predicated region
  $region2: #{tile.18} parent=0 // pred_check
    _
  $region3: #{tile.18} parent=0 // pred_check_branch
    %3 = sbr.rel (0) target = $region5
  $region4: #{tile.18} parent=0 // pred_region
    _
  $region5: #{tile.18} parent=0 // pred_fallthru
    _
  %v4 = vld [vmem:[%s0] ss:$0 sm:$0xff]
  %5 = vst [vmem:[%s1] sm:$0xff] %v4
  %s6 = scalar_lea.vmem %s1, 8
  %7 = vst [vmem:[%s6] sm:$0xff] %v4

// kernel: tile.19
$region0: #{tile.19}
  %s0 = inlined_call_operand.vmem [shape: f32[9,8], index: 0, kind: input, shape index: {}]
  %s1 = inlined_call_operand.vmem [shape: f32[1,72], index: 1, kind: output, shape index: {}]
  $region1: #{tile.19} parent=0
    #allocation0 [shape = 'u8[4096]{0}', space=vmem, size = 0x1000, scoped, tag = 'scoped mem for output reshape']
    %v2 = vld [vmem:[%s0] sm:$0x1]
    %vm3 = vcmask 64512
    %4 = vst.msk [vmem:[#allocation0] sm:$0x1] %vm3, %v2
    %s5 = scalar_lea.vmem %s0, 8
    %v6 = vld [vmem:[%s5] sm:$0x1]
    %7 = vrot.lane.b32.xlu0 %v6, 64
    %v8 = vpop.permute.xlu0 %7
    %vm9 = vcmask 589312
    %10 = vst.msk [vmem:[#allocation0] sm:$0x1] %vm9, %v8
    %s11 = scalar_lea.vmem %s0, 7
    %v12 = vld [vmem:[%s11] sm:$0x1]
    %13 = vrot.lane.b32.xlu0 %v12, 56
    %v14 = vpop.permute.xlu0 %13
    %vm15 = vcmask 523712
    %16 = vst.msk [vmem:[#allocation0] sm:$0x1] %vm15, %v14
    %s17 = scalar_lea.vmem %s0, 6
    %v18 = vld [vmem:[%s17] sm:$0x1]
    %19 = vrot.lane.b32.xlu0 %v18, 48
    %v20 = vpop.permute.xlu0 %19
    %vm21 = vcmask 458112
    %22 = vst.msk [vmem:[#allocation0] sm:$0x1] %vm21, %v20
    %s23 = scalar_lea.vmem %s0, 5
    %v24 = vld [vmem:[%s23] sm:$0x1]
    %25 = vrot.lane.b32.xlu0 %v24, 40
    %v26 = vpop.permute.xlu0 %25
    %vm27 = vcmask 392512
    %28 = vst.msk [vmem:[#allocation0] sm:$0x1] %vm27, %v26
    %s29 = scalar_lea.vmem %s0, 4
    %v30 = vld [vmem:[%s29] sm:$0x1]
    %31 = vrot.lane.b32.xlu0 %v30, 32
    %v32 = vpop.permute.xlu0 %31
    %vm33 = vcmask 326912
    %34 = vst.msk [vmem:[#allocation0] sm:$0x1] %vm33, %v32
    %s35 = scalar_lea.vmem %s0, 3
    %v36 = vld [vmem:[%s35] sm:$0x1]
    %37 = vrot.lane.b32.xlu0 %v36, 24
    %v38 = vpop.permute.xlu0 %37
    %vm39 = vcmask 261312
    %40 = vst.msk [vmem:[#allocation0] sm:$0x1] %vm39, %v38
    %s41 = scalar_lea.vmem %s0, 2
    %v42 = vld [vmem:[%s41] sm:$0x1]
    %43 = vrot.lane.b32.xlu0 %v42, 16
    %v44 = vpop.permute.xlu0 %43
    %vm45 = vcmask 195712
    %46 = vst.msk [vmem:[#allocation0] sm:$0x1] %vm45, %v44
    %s47 = scalar_lea.vmem %s0, 1
    %v48 = vld [vmem:[%s47] sm:$0x1]
    %49 = vrot.lane.b32.xlu0 %v48, 8
    %v50 = vpop.permute.xlu0 %49
    %vm51 = vcmask 130112
    %52 = vst.msk [vmem:[#allocation0] sm:$0x1] %vm51, %v50
    %s54 = sshllo.u32 0, 1
    %v56 = vld [vmem:[#allocation0] sm:%s54]
    %s57 = sshllo.u32 0, 1
    %58 = vst [vmem:[%s1] sm:%s57] %v56

// kernel: lora_fft_v2_forward.1
$region0: #{lora_fft_v2_forward.1}
  #allocation0 [shape = 'u32[]', space=smem, size = 0x4, offset = 0x4, fixed_abs, tag = 'smem constant byte address 0x4 - core index']
  #allocation1 [shape = 'u32[144,128]{1,0:T(1,128)}', space=vmem, size = 0x12000, scoped, tag = 'internal scratch']
  %s0 = inlined_call_operand.vmem [shape: f32[2,16,512], index: 0, kind: input, shape index: {}]
  %s1 = inlined_call_operand.vmem [shape: bf16[512,128], index: 1, kind: input, shape index: {}]
  %s2 = inlined_call_operand.vmem [shape: bf16[128,72], index: 2, kind: input, shape index: {}]
  %s3 = inlined_call_operand.vmem [shape: bf16[128,72], index: 3, kind: input, shape index: {}]
  %s4 = inlined_call_operand.vmem [shape: bf16[16,16], index: 4, kind: input, shape index: {}]
  %s5 = inlined_call_operand.vmem [shape: bf16[16,16], index: 5, kind: input, shape index: {}]
  %s6 = inlined_call_operand.vmem [shape: bf16[72,72], index: 6, kind: input, shape index: {}]
  %s7 = inlined_call_operand.vmem [shape: f32[1,72], index: 7, kind: input, shape index: {}]
  %s8 = inlined_call_operand.vmem [shape: bf16[72,72], index: 8, kind: input, shape index: {}]
  %s9 = inlined_call_operand.vmem [shape: f32[1,72], index: 9, kind: input, shape index: {}]
  %s10 = inlined_call_operand.vmem [shape: bf16[72,72], index: 10, kind: input, shape index: {}]
  %s11 = inlined_call_operand.vmem [shape: f32[1,72], index: 11, kind: input, shape index: {}]
  %s12 = inlined_call_operand.vmem [shape: f32[72,72], index: 12, kind: input, shape index: {}]
  %s13 = inlined_call_operand.vmem [shape: bf16[72,128], index: 13, kind: input, shape index: {}]
  %s14 = inlined_call_operand.vmem [shape: bf16[72,128], index: 14, kind: input, shape index: {}]
  %s15 = inlined_call_operand.vmem [shape: bf16[128,512], index: 15, kind: input, shape index: {}]
  %s16 = inlined_call_operand.vmem [shape: f32[2,16,512], index: 16, kind: output, shape index: {}]
  %s17 = sld [smem:[#allocation0]]
  $region97: #{lora_fft_v2_forward.1} parent=0
    _
  %s19 = ssub.s32 1, %s17
  %s20 = scalar_select 0, %s19, %s17
  loop: start=0, step=1, limit=4
  $region2: #{lora_fft_v2_forward.1} parent=0 // loop_pre_header
    _
  $region3: #{lora_fft_v2_forward.1} parent=0 // loop_header
    %s22 = sphi 0, %s26
    %p23 = scmp.ge.s32.totalorder %s22, 4
    %s32 = sphi 0, %s34
    %s35 = sphi 0, %s32
    %s36 = sphi 0, %s35
    %s52 = sphi 0, %s36
    %s56 = sphi 0, %s56
    %s58 = sphi 0, %s56
    %s59 = sphi 0, %s58
    %s73 = sphi 0, %s59
    %s77 = sphi 0, %s77
    %s79 = sphi 0, %s77
    %s80 = sphi 0, %s79
    %s94 = sphi 0, %s80
    %s98 = sphi 0, %s98
    %s100 = sphi 0, %s98
    %s101 = sphi 0, %s100
    %s115 = sphi 0, %s101
    %s119 = sphi 0, %s119
    %s121 = sphi 0, %s119
    %s122 = sphi 0, %s121
    %s136 = sphi 0, %s122
    %s140 = sphi 0, %s140
    %s142 = sphi 0, %s140
    %s143 = sphi 0, %s142
    %s157 = sphi 0, %s143
    %s161 = sphi 0, %s161
    %s163 = sphi 0, %s161
    %s164 = sphi 0, %s163
    %s178 = sphi 0, %s164
    %s182 = sphi 0, %s182
    %s184 = sphi 0, %s182
    %s185 = sphi 0, %s184
    %s199 = sphi 0, %s185
    %s203 = sphi 0, %s203
    %s205 = sphi 0, %s203
    %s206 = sphi 0, %s205
    %s220 = sphi 0, %s206
    %s224 = sphi 0, %s224
    %s226 = sphi 0, %s224
    %s227 = sphi 0, %s226
    %s241 = sphi 0, %s227
    %s245 = sphi 0, %s245
    %s247 = sphi 0, %s245
    %s248 = sphi 0, %s247
    %s262 = sphi 0, %s248
    %s266 = sphi 0, %s266
    %s268 = sphi 0, %s266
    %s269 = sphi 0, %s268
    %s283 = sphi 0, %s269
    %s287 = sphi 0, %s287
    %s289 = sphi 0, %s287
    %s290 = sphi 0, %s289
    %s304 = sphi 0, %s290
    %s308 = sphi 0, %s308
    %s310 = sphi 0, %s308
    %s311 = sphi 0, %s310
    %s325 = sphi 0, %s311
    %s329 = sphi 0, %s329
    %s331 = sphi 0, %s329
    %s332 = sphi 0, %s331
    %s346 = sphi 0, %s332
    %s350 = sphi 0, %s350
    %s352 = sphi 0, %s350
    %s353 = sphi 0, %s352
    %s367 = sphi 0, %s353
    %s373 = sphi 0, %s375
    %s376 = sphi 0, %s373
    %s377 = sphi 0, %s376
    %s393 = sphi 0, %s377
  $region4: #{lora_fft_v2_forward.1} parent=0 // loop_header_branch
    %25 = sbr.rel (%p23) target = $region8
  $region5: #{lora_fft_v2_forward.1} parent=0 // loop_body
    %s27 = ssub.s32 %s22, 1
    %s28 = ssub.s32 %s22, 2
    %s29 = sadd.s32 %s22, 1
    %s30 = ssub.s32 %s22, %s29
    %p31 = scmp.eq.s32.totalorder %s30, 0
    %s33 = sadd.s32 %s32, 1
    %s34 = scalar_select %p31, %s32, %s33
    %p37 = pneg %p31
    %p38 = scmp.eq.s32.totalorder %s22, 1
    %p39 = por %p37, %p38
    %p40 = scmp.ne.s32.totalorder %s32, %s35
    %p41 = scmp.eq.s32.totalorder %s22, 0
    %p42 = por %p40, %p41
    %p43 = scmp.ne.s32.totalorder %s32, %s35
    %p44 = scmp.eq.s32.totalorder %s27, 1
    %p45 = por %p43, %p44
    %p46 = scmp.ne.s32.totalorder %s35, %s36
    %p47 = scmp.eq.s32.totalorder %s27, 0
    %p48 = por %p46, %p47
    %p49 = scmp.ne.s32.totalorder %s35, %s36
    %p50 = scmp.eq.s32.totalorder %s28, 1
    %p51 = por %p49, %p50
    %p53 = scmp.ne.s32.totalorder %s36, %s52
    %p54 = scmp.eq.s32.totalorder %s28, 0
    %p55 = por %p53, %p54
    %s57 = sadd.s32 %s56, 1
    %p60 = scmp.eq.s32.totalorder %s22, 1
    %p61 = scmp.ne.s32.totalorder %s56, %s58
    %p62 = scmp.eq.s32.totalorder %s22, 0
    %p63 = por %p61, %p62
    %p64 = scmp.ne.s32.totalorder %s56, %s58
    %p65 = scmp.eq.s32.totalorder %s27, 1
    %p66 = por %p64, %p65
    %p67 = scmp.ne.s32.totalorder %s58, %s59
    %p68 = scmp.eq.s32.totalorder %s27, 0
    %p69 = por %p67, %p68
    %p70 = scmp.ne.s32.totalorder %s58, %s59
    %p71 = scmp.eq.s32.totalorder %s28, 1
    %p72 = por %p70, %p71
    %p74 = scmp.ne.s32.totalorder %s59, %s73
    %p75 = scmp.eq.s32.totalorder %s28, 0
    %p76 = por %p74, %p75
    %s78 = sadd.s32 %s77, 1
    %p81 = scmp.eq.s32.totalorder %s22, 1
    %p82 = scmp.ne.s32.totalorder %s77, %s79
    %p83 = scmp.eq.s32.totalorder %s22, 0
    %p84 = por %p82, %p83
    %p85 = scmp.ne.s32.totalorder %s77, %s79
    %p86 = scmp.eq.s32.totalorder %s27, 1
    %p87 = por %p85, %p86
    %p88 = scmp.ne.s32.totalorder %s79, %s80
    %p89 = scmp.eq.s32.totalorder %s27, 0
    %p90 = por %p88, %p89
    %p91 = scmp.ne.s32.totalorder %s79, %s80
    %p92 = scmp.eq.s32.totalorder %s28, 1
    %p93 = por %p91, %p92
    %p95 = scmp.ne.s32.totalorder %s80, %s94
    %p96 = scmp.eq.s32.totalorder %s28, 0
    %p97 = por %p95, %p96
    %s99 = sadd.s32 %s98, 1
    %p102 = scmp.eq.s32.totalorder %s22, 1
    %p103 = scmp.ne.s32.totalorder %s98, %s100
    %p104 = scmp.eq.s32.totalorder %s22, 0
    %p105 = por %p103, %p104
    %p106 = scmp.ne.s32.totalorder %s98, %s100
    %p107 = scmp.eq.s32.totalorder %s27, 1
    %p108 = por %p106, %p107
    %p109 = scmp.ne.s32.totalorder %s100, %s101
    %p110 = scmp.eq.s32.totalorder %s27, 0
    %p111 = por %p109, %p110
    %p112 = scmp.ne.s32.totalorder %s100, %s101
    %p113 = scmp.eq.s32.totalorder %s28, 1
    %p114 = por %p112, %p113
    %p116 = scmp.ne.s32.totalorder %s101, %s115
    %p117 = scmp.eq.s32.totalorder %s28, 0
    %p118 = por %p116, %p117
    %s120 = sadd.s32 %s119, 1
    %p123 = scmp.eq.s32.totalorder %s22, 1
    %p124 = scmp.ne.s32.totalorder %s119, %s121
    %p125 = scmp.eq.s32.totalorder %s22, 0
    %p126 = por %p124, %p125
    %p127 = scmp.ne.s32.totalorder %s119, %s121
    %p128 = scmp.eq.s32.totalorder %s27, 1
    %p129 = por %p127, %p128
    %p130 = scmp.ne.s32.totalorder %s121, %s122
    %p131 = scmp.eq.s32.totalorder %s27, 0
    %p132 = por %p130, %p131
    %p133 = scmp.ne.s32.totalorder %s121, %s122
    %p134 = scmp.eq.s32.totalorder %s28, 1
    %p135 = por %p133, %p134
    %p137 = scmp.ne.s32.totalorder %s122, %s136
    %p138 = scmp.eq.s32.totalorder %s28, 0
    %p139 = por %p137, %p138
    %s141 = sadd.s32 %s140, 1
    %p144 = scmp.eq.s32.totalorder %s22, 1
    %p145 = scmp.ne.s32.totalorder %s140, %s142
    %p146 = scmp.eq.s32.totalorder %s22, 0
    %p147 = por %p145, %p146
    %p148 = scmp.ne.s32.totalorder %s140, %s142
    %p149 = scmp.eq.s32.totalorder %s27, 1
    %p150 = por %p148, %p149
    %p151 = scmp.ne.s32.totalorder %s142, %s143
    %p152 = scmp.eq.s32.totalorder %s27, 0
    %p153 = por %p151, %p152
    %p154 = scmp.ne.s32.totalorder %s142, %s143
    %p155 = scmp.eq.s32.totalorder %s28, 1
    %p156 = por %p154, %p155
    %p158 = scmp.ne.s32.totalorder %s143, %s157
    %p159 = scmp.eq.s32.totalorder %s28, 0
    %p160 = por %p158, %p159
    %s162 = sadd.s32 %s161, 1
    %p165 = scmp.eq.s32.totalorder %s22, 1
    %p166 = scmp.ne.s32.totalorder %s161, %s163
    %p167 = scmp.eq.s32.totalorder %s22, 0
    %p168 = por %p166, %p167
    %p169 = scmp.ne.s32.totalorder %s161, %s163
    %p170 = scmp.eq.s32.totalorder %s27, 1
    %p171 = por %p169, %p170
    %p172 = scmp.ne.s32.totalorder %s163, %s164
    %p173 = scmp.eq.s32.totalorder %s27, 0
    %p174 = por %p172, %p173
    %p175 = scmp.ne.s32.totalorder %s163, %s164
    %p176 = scmp.eq.s32.totalorder %s28, 1
    %p177 = por %p175, %p176
    %p179 = scmp.ne.s32.totalorder %s164, %s178
    %p180 = scmp.eq.s32.totalorder %s28, 0
    %p181 = por %p179, %p180
    %s183 = sadd.s32 %s182, 1
    %p186 = scmp.eq.s32.totalorder %s22, 1
    %p187 = scmp.ne.s32.totalorder %s182, %s184
    %p188 = scmp.eq.s32.totalorder %s22, 0
    %p189 = por %p187, %p188
    %p190 = scmp.ne.s32.totalorder %s182, %s184
    %p191 = scmp.eq.s32.totalorder %s27, 1
    %p192 = por %p190, %p191
    %p193 = scmp.ne.s32.totalorder %s184, %s185
    %p194 = scmp.eq.s32.totalorder %s27, 0
    %p195 = por %p193, %p194
    %p196 = scmp.ne.s32.totalorder %s184, %s185
    %p197 = scmp.eq.s32.totalorder %s28, 1
    %p198 = por %p196, %p197
    %p200 = scmp.ne.s32.totalorder %s185, %s199
    %p201 = scmp.eq.s32.totalorder %s28, 0
    %p202 = por %p200, %p201
    %s204 = sadd.s32 %s203, 1
    %p207 = scmp.eq.s32.totalorder %s22, 1
    %p208 = scmp.ne.s32.totalorder %s203, %s205
    %p209 = scmp.eq.s32.totalorder %s22, 0
    %p210 = por %p208, %p209
    %p211 = scmp.ne.s32.totalorder %s203, %s205
    %p212 = scmp.eq.s32.totalorder %s27, 1
    %p213 = por %p211, %p212
    %p214 = scmp.ne.s32.totalorder %s205, %s206
    %p215 = scmp.eq.s32.totalorder %s27, 0
    %p216 = por %p214, %p215
    %p217 = scmp.ne.s32.totalorder %s205, %s206
    %p218 = scmp.eq.s32.totalorder %s28, 1
    %p219 = por %p217, %p218
    %p221 = scmp.ne.s32.totalorder %s206, %s220
    %p222 = scmp.eq.s32.totalorder %s28, 0
    %p223 = por %p221, %p222
    %s225 = sadd.s32 %s224, 1
    %p228 = scmp.eq.s32.totalorder %s22, 1
    %p229 = scmp.ne.s32.totalorder %s224, %s226
    %p230 = scmp.eq.s32.totalorder %s22, 0
    %p231 = por %p229, %p230
    %p232 = scmp.ne.s32.totalorder %s224, %s226
    %p233 = scmp.eq.s32.totalorder %s27, 1
    %p234 = por %p232, %p233
    %p235 = scmp.ne.s32.totalorder %s226, %s227
    %p236 = scmp.eq.s32.totalorder %s27, 0
    %p237 = por %p235, %p236
    %p238 = scmp.ne.s32.totalorder %s226, %s227
    %p239 = scmp.eq.s32.totalorder %s28, 1
    %p240 = por %p238, %p239
    %p242 = scmp.ne.s32.totalorder %s227, %s241
    %p243 = scmp.eq.s32.totalorder %s28, 0
    %p244 = por %p242, %p243
    %s246 = sadd.s32 %s245, 1
    %p249 = scmp.eq.s32.totalorder %s22, 1
    %p250 = scmp.ne.s32.totalorder %s245, %s247
    %p251 = scmp.eq.s32.totalorder %s22, 0
    %p252 = por %p250, %p251
    %p253 = scmp.ne.s32.totalorder %s245, %s247
    %p254 = scmp.eq.s32.totalorder %s27, 1
    %p255 = por %p253, %p254
    %p256 = scmp.ne.s32.totalorder %s247, %s248
    %p257 = scmp.eq.s32.totalorder %s27, 0
    %p258 = por %p256, %p257
    %p259 = scmp.ne.s32.totalorder %s247, %s248
    %p260 = scmp.eq.s32.totalorder %s28, 1
    %p261 = por %p259, %p260
    %p263 = scmp.ne.s32.totalorder %s248, %s262
    %p264 = scmp.eq.s32.totalorder %s28, 0
    %p265 = por %p263, %p264
    %s267 = sadd.s32 %s266, 1
    %p270 = scmp.eq.s32.totalorder %s22, 1
    %p271 = scmp.ne.s32.totalorder %s266, %s268
    %p272 = scmp.eq.s32.totalorder %s22, 0
    %p273 = por %p271, %p272
    %p274 = scmp.ne.s32.totalorder %s266, %s268
    %p275 = scmp.eq.s32.totalorder %s27, 1
    %p276 = por %p274, %p275
    %p277 = scmp.ne.s32.totalorder %s268, %s269
    %p278 = scmp.eq.s32.totalorder %s27, 0
    %p279 = por %p277, %p278
    %p280 = scmp.ne.s32.totalorder %s268, %s269
    %p281 = scmp.eq.s32.totalorder %s28, 1
    %p282 = por %p280, %p281
    %p284 = scmp.ne.s32.totalorder %s269, %s283
    %p285 = scmp.eq.s32.totalorder %s28, 0
    %p286 = por %p284, %p285
    %s288 = sadd.s32 %s287, 1
    %p291 = scmp.eq.s32.totalorder %s22, 1
    %p292 = scmp.ne.s32.totalorder %s287, %s289
    %p293 = scmp.eq.s32.totalorder %s22, 0
    %p294 = por %p292, %p293
    %p295 = scmp.ne.s32.totalorder %s287, %s289
    %p296 = scmp.eq.s32.totalorder %s27, 1
    %p297 = por %p295, %p296
    %p298 = scmp.ne.s32.totalorder %s289, %s290
    %p299 = scmp.eq.s32.totalorder %s27, 0
    %p300 = por %p298, %p299
    %p301 = scmp.ne.s32.totalorder %s289, %s290
    %p302 = scmp.eq.s32.totalorder %s28, 1
    %p303 = por %p301, %p302
    %p305 = scmp.ne.s32.totalorder %s290, %s304
    %p306 = scmp.eq.s32.totalorder %s28, 0
    %p307 = por %p305, %p306
    %s309 = sadd.s32 %s308, 1
    %p312 = scmp.eq.s32.totalorder %s22, 1
    %p313 = scmp.ne.s32.totalorder %s308, %s310
    %p314 = scmp.eq.s32.totalorder %s22, 0
    %p315 = por %p313, %p314
    %p316 = scmp.ne.s32.totalorder %s308, %s310
    %p317 = scmp.eq.s32.totalorder %s27, 1
    %p318 = por %p316, %p317
    %p319 = scmp.ne.s32.totalorder %s310, %s311
    %p320 = scmp.eq.s32.totalorder %s27, 0
    %p321 = por %p319, %p320
    %p322 = scmp.ne.s32.totalorder %s310, %s311
    %p323 = scmp.eq.s32.totalorder %s28, 1
    %p324 = por %p322, %p323
    %p326 = scmp.ne.s32.totalorder %s311, %s325
    %p327 = scmp.eq.s32.totalorder %s28, 0
    %p328 = por %p326, %p327
    %s330 = sadd.s32 %s329, 1
    %p333 = scmp.eq.s32.totalorder %s22, 1
    %p334 = scmp.ne.s32.totalorder %s329, %s331
    %p335 = scmp.eq.s32.totalorder %s22, 0
    %p336 = por %p334, %p335
    %p337 = scmp.ne.s32.totalorder %s329, %s331
    %p338 = scmp.eq.s32.totalorder %s27, 1
    %p339 = por %p337, %p338
    %p340 = scmp.ne.s32.totalorder %s331, %s332
    %p341 = scmp.eq.s32.totalorder %s27, 0
    %p342 = por %p340, %p341
    %p343 = scmp.ne.s32.totalorder %s331, %s332
    %p344 = scmp.eq.s32.totalorder %s28, 1
    %p345 = por %p343, %p344
    %p347 = scmp.ne.s32.totalorder %s332, %s346
    %p348 = scmp.eq.s32.totalorder %s28, 0
    %p349 = por %p347, %p348
    %s351 = sadd.s32 %s350, 1
    %p354 = scmp.eq.s32.totalorder %s22, 1
    %p355 = scmp.ne.s32.totalorder %s350, %s352
    %p356 = scmp.eq.s32.totalorder %s22, 0
    %p357 = por %p355, %p356
    %p358 = scmp.ne.s32.totalorder %s350, %s352
    %p359 = scmp.eq.s32.totalorder %s27, 1
    %p360 = por %p358, %p359
    %p361 = scmp.ne.s32.totalorder %s352, %s353
    %p362 = scmp.eq.s32.totalorder %s27, 0
    %p363 = por %p361, %p362
    %p364 = scmp.ne.s32.totalorder %s352, %s353
    %p365 = scmp.eq.s32.totalorder %s28, 1
    %p366 = por %p364, %p365
    %p368 = scmp.ne.s32.totalorder %s353, %s367
    %p369 = scmp.eq.s32.totalorder %s28, 0
    %p370 = por %p368, %p369
    %s371 = ssub.s32 %s22, %s29
    %p372 = scmp.eq.s32.totalorder %s371, 0
    %s374 = sadd.s32 %s373, 1
    %s375 = scalar_select %p372, %s373, %s374
    %p378 = pneg %p372
    %p379 = scmp.eq.s32.totalorder %s22, 1
    %p380 = por %p378, %p379
    %p381 = scmp.ne.s32.totalorder %s373, %s376
    %p382 = scmp.eq.s32.totalorder %s22, 0
    %p383 = por %p381, %p382
    %p384 = scmp.ne.s32.totalorder %s373, %s376
    %p385 = scmp.eq.s32.totalorder %s27, 1
    %p386 = por %p384, %p385
    %p387 = scmp.ne.s32.totalorder %s376, %s377
    %p388 = scmp.eq.s32.totalorder %s27, 0
    %p389 = por %p387, %p388
    %p390 = scmp.ne.s32.totalorder %s376, %s377
    %p391 = scmp.eq.s32.totalorder %s28, 1
    %p392 = por %p390, %p391
    %p394 = scmp.ne.s32.totalorder %s377, %s393
    %p395 = scmp.eq.s32.totalorder %s28, 0
    %p396 = por %p394, %p395
    %p397 = scmp.le.s32.totalorder 1, %s22
    %p398 = scmp.lt.s32.totalorder %s22, 3
    %p399 = pnand %p397, %p398
    %p400 = pneg %p399
    // Predicated region
    $region9: #{lora_fft_v2_forward.1} parent=5 // pred_check
      _
    $region10: #{lora_fft_v2_forward.1} parent=5 // pred_check_branch
      %402 = sbr.rel (%p399) target = $region12
    $region11: #{lora_fft_v2_forward.1} parent=5 // pred_region
      %s403 = ssub.s32 %s22, 1
      // Predicated region
      $region13: #{lora_fft_v2_forward.1} parent=11 // pred_check
        %p404 = pneg %p69
      $region14: #{lora_fft_v2_forward.1} parent=11 // pred_check_branch
        %406 = sbr.rel (%p404) target = $region16
      $region15: #{lora_fft_v2_forward.1} parent=11 // pred_region
        _
      $region16: #{lora_fft_v2_forward.1} parent=11 // pred_fallthru
        _
      // Predicated region
      $region17: #{lora_fft_v2_forward.1} parent=11 // pred_check
        %p407 = pneg %p90
      $region18: #{lora_fft_v2_forward.1} parent=11 // pred_check_branch
        %409 = sbr.rel (%p407) target = $region20
      $region19: #{lora_fft_v2_forward.1} parent=11 // pred_region
        _
      $region20: #{lora_fft_v2_forward.1} parent=11 // pred_fallthru
        _
      // Predicated region
      $region21: #{lora_fft_v2_forward.1} parent=11 // pred_check
        %p410 = pneg %p111
      $region22: #{lora_fft_v2_forward.1} parent=11 // pred_check_branch
        %412 = sbr.rel (%p410) target = $region24
      $region23: #{lora_fft_v2_forward.1} parent=11 // pred_region
        _
      $region24: #{lora_fft_v2_forward.1} parent=11 // pred_fallthru
        _
      // Predicated region
      $region25: #{lora_fft_v2_forward.1} parent=11 // pred_check
        %p413 = pneg %p132
      $region26: #{lora_fft_v2_forward.1} parent=11 // pred_check_branch
        %415 = sbr.rel (%p413) target = $region28
      $region27: #{lora_fft_v2_forward.1} parent=11 // pred_region
        _
      $region28: #{lora_fft_v2_forward.1} parent=11 // pred_fallthru
        _
      // Predicated region
      $region29: #{lora_fft_v2_forward.1} parent=11 // pred_check
        %p416 = pneg %p153
      $region30: #{lora_fft_v2_forward.1} parent=11 // pred_check_branch
        %418 = sbr.rel (%p416) target = $region32
      $region31: #{lora_fft_v2_forward.1} parent=11 // pred_region
        _
      $region32: #{lora_fft_v2_forward.1} parent=11 // pred_fallthru
        _
      // Predicated region
      $region33: #{lora_fft_v2_forward.1} parent=11 // pred_check
        %p419 = pneg %p174
      $region34: #{lora_fft_v2_forward.1} parent=11 // pred_check_branch
        %421 = sbr.rel (%p419) target = $region36
      $region35: #{lora_fft_v2_forward.1} parent=11 // pred_region
        _
      $region36: #{lora_fft_v2_forward.1} parent=11 // pred_fallthru
        _
      // Predicated region
      $region37: #{lora_fft_v2_forward.1} parent=11 // pred_check
        %p422 = pneg %p195
      $region38: #{lora_fft_v2_forward.1} parent=11 // pred_check_branch
        %424 = sbr.rel (%p422) target = $region40
      $region39: #{lora_fft_v2_forward.1} parent=11 // pred_region
        _
      $region40: #{lora_fft_v2_forward.1} parent=11 // pred_fallthru
        _
      // Predicated region
      $region41: #{lora_fft_v2_forward.1} parent=11 // pred_check
        %p425 = pneg %p216
      $region42: #{lora_fft_v2_forward.1} parent=11 // pred_check_branch
        %427 = sbr.rel (%p425) target = $region44
      $region43: #{lora_fft_v2_forward.1} parent=11 // pred_region
        _
      $region44: #{lora_fft_v2_forward.1} parent=11 // pred_fallthru
        _
      // Predicated region
      $region45: #{lora_fft_v2_forward.1} parent=11 // pred_check
        %p428 = pneg %p237
      $region46: #{lora_fft_v2_forward.1} parent=11 // pred_check_branch
        %430 = sbr.rel (%p428) target = $region48
      $region47: #{lora_fft_v2_forward.1} parent=11 // pred_region
        _
      $region48: #{lora_fft_v2_forward.1} parent=11 // pred_fallthru
        _
      // Predicated region
      $region49: #{lora_fft_v2_forward.1} parent=11 // pred_check
        %p431 = pneg %p258
      $region50: #{lora_fft_v2_forward.1} parent=11 // pred_check_branch
        %433 = sbr.rel (%p431) target = $region52
      $region51: #{lora_fft_v2_forward.1} parent=11 // pred_region
        _
      $region52: #{lora_fft_v2_forward.1} parent=11 // pred_fallthru
        _
      // Predicated region
      $region53: #{lora_fft_v2_forward.1} parent=11 // pred_check
        %p434 = pneg %p279
      $region54: #{lora_fft_v2_forward.1} parent=11 // pred_check_branch
        %436 = sbr.rel (%p434) target = $region56
      $region55: #{lora_fft_v2_forward.1} parent=11 // pred_region
        _
      $region56: #{lora_fft_v2_forward.1} parent=11 // pred_fallthru
        _
      // Predicated region
      $region57: #{lora_fft_v2_forward.1} parent=11 // pred_check
        %p437 = pneg %p300
      $region58: #{lora_fft_v2_forward.1} parent=11 // pred_check_branch
        %439 = sbr.rel (%p437) target = $region60
      $region59: #{lora_fft_v2_forward.1} parent=11 // pred_region
        _
      $region60: #{lora_fft_v2_forward.1} parent=11 // pred_fallthru
        _
      // Predicated region
      $region61: #{lora_fft_v2_forward.1} parent=11 // pred_check
        %p440 = pneg %p321
      $region62: #{lora_fft_v2_forward.1} parent=11 // pred_check_branch
        %442 = sbr.rel (%p440) target = $region64
      $region63: #{lora_fft_v2_forward.1} parent=11 // pred_region
        _
      $region64: #{lora_fft_v2_forward.1} parent=11 // pred_fallthru
        _
      // Predicated region
      $region65: #{lora_fft_v2_forward.1} parent=11 // pred_check
        %p443 = pneg %p342
      $region66: #{lora_fft_v2_forward.1} parent=11 // pred_check_branch
        %445 = sbr.rel (%p443) target = $region68
      $region67: #{lora_fft_v2_forward.1} parent=11 // pred_region
        _
      $region68: #{lora_fft_v2_forward.1} parent=11 // pred_fallthru
        _
      // Predicated region
      $region69: #{lora_fft_v2_forward.1} parent=11 // pred_check
        %p446 = pneg %p363
      $region70: #{lora_fft_v2_forward.1} parent=11 // pred_check_branch
        %448 = sbr.rel (%p446) target = $region72
      $region71: #{lora_fft_v2_forward.1} parent=11 // pred_region
        _
      $region72: #{lora_fft_v2_forward.1} parent=11 // pred_fallthru
        _
    $region12: #{lora_fft_v2_forward.1} parent=5 // pred_fallthru
      _
    %p449 = scmp.lt.s32.totalorder %s22, 2
    // Predicated region
    $region73: #{lora_fft_v2_forward.1} parent=5 // pred_check
      %p450 = pneg %p449
    $region74: #{lora_fft_v2_forward.1} parent=5 // pred_check_branch
      %452 = sbr.rel (%p450) target = $region76
    $region75: #{lora_fft_v2_forward.1} parent=5 // pred_region
      // Predicated region
      $region77: #{lora_fft_v2_forward.1} parent=75 // pred_check
        %p453 = pneg %p42
      $region78: #{lora_fft_v2_forward.1} parent=75 // pred_check_branch
        %455 = sbr.rel (%p453) target = $region80
      $region79: #{lora_fft_v2_forward.1} parent=75 // pred_region
        %p456 = scmp.lt.s32.totalorder %s22, 1
        %s457 = scalar_select %p456, %s22, 1
        %s458 = smul.addr %s457, 8
        %s459 = smul.addr %s458, 8
        %s460 = scalar_lea.vmem %s0, %s459
      $region80: #{lora_fft_v2_forward.1} parent=75 // pred_fallthru
        _
    $region76: #{lora_fft_v2_forward.1} parent=5 // pred_fallthru
      _
    %p461 = scmp.le.s32.totalorder 1, %s22
    %p462 = scmp.lt.s32.totalorder %s22, 3
    %p463 = pnand %p461, %p462
    %p464 = pneg %p463
    // Predicated region
    $region81: #{lora_fft_v2_forward.1} parent=5 // pred_check
      _
    $region82: #{lora_fft_v2_forward.1} parent=5 // pred_check_branch
      %466 = sbr.rel (%p463) target = $region84
    $region83: #{lora_fft_v2_forward.1} parent=5 // pred_region
      %s467 = ssub.s32 %s22, 1
      %p468 = scmp.lt.s32.totalorder %s27, 1
      %s469 = scalar_select %p468, %s27, 1
      %s470 = smul.addr %s469, 8
      %s471 = smul.addr %s470, 8
      %s472 = scalar_lea.vmem %s0, %s471
      %p473 = pneg %p48
      %p474 = pneg %p45
      %p475 = pneg %p69
      %p476 = pneg %p66
      %p477 = pneg %p90
      %p478 = pneg %p87
      %p479 = pneg %p111
      %p480 = pneg %p108
      %p481 = pneg %p132
      %p482 = pneg %p129
      %p483 = pneg %p153
      %p484 = pneg %p150
      %p485 = pneg %p174
      %p486 = pneg %p171
      %p487 = pneg %p195
      %p488 = pneg %p192
      %p489 = pneg %p216
      %p490 = pneg %p213
      %p491 = pneg %p237
      %p492 = pneg %p234
      %p493 = pneg %p258
      %p494 = pneg %p255
      %p495 = pneg %p279
      %p496 = pneg %p276
      %p497 = pneg %p300
      %p498 = pneg %p297
      %p499 = pneg %p321
      %p500 = pneg %p318
      %p501 = pneg %p342
      %p502 = pneg %p339
      %p503 = pneg %p363
      %p504 = pneg %p360
      %p505 = pneg %p389
      %p506 = pneg %p386
      %p507 = scmp.lt.s32.totalorder %s27, 1
      %s508 = scalar_select %p507, %s27, 1
      %s509 = smul.addr %s508, 8
      %s510 = smul.addr %s509, 8
      %s511 = scalar_lea.vmem %s16, %s510
      %p512 = scmp.lt.s32.totalorder %s27, 1
      %s513 = scalar_select %p512, %s27, 1
      %s514 = smul.addr %s513, 8
      %s515 = smul.addr %s514, 8
      %s516 = scalar_lea.vmem %s0, %s515
      %p517 = scmp.lt.s32.totalorder %s27, 1
      %s518 = scalar_select %p517, %s27, 1
      %s519 = smul.addr %s518, 8
      %s520 = smul.addr %s519, 8
      %s521 = scalar_lea.vmem %s16, %s520
      %v523 = vld [vmem:[%s4] sm:$0xf]
      %v524 = vld [vmem:[%s4 + $0x4] sm:$0xf]
      %v525 = vld [vmem:[%s5] sm:$0xf]
      %v526 = vld [vmem:[%s5 + $0x4] sm:$0xf]
      %v527 = vld [vmem:[%s516] sm:$0xff]
      %v528 = vld [vmem:[%s516 + $0x8] sm:$0xff]
      %v529 = vld [vmem:[%s516 + $0x10] sm:$0xff]
      %v530 = vld [vmem:[%s516 + $0x18] sm:$0xff]
      %v531 = vld [vmem:[%s516 + $0x20] sm:$0xff]
      %v532 = vld [vmem:[%s516 + $0x28] sm:$0xff]
      %v533 = vld [vmem:[%s516 + $0x30] sm:$0xff]
      %v534 = vld [vmem:[%s516 + $0x38] sm:$0xff]
      %v535 = vld [vmem:[%s1] sm:$0xf]
      %v536 = vld [vmem:[%s1 + $0x4] sm:$0xf]
      %v537 = vld [vmem:[%s1 + $0x8] sm:$0xf]
      %v538 = vld [vmem:[%s1 + $0xc] sm:$0xf]
      %v539 = vld [vmem:[%s1 + $0x10] sm:$0xf]
      %v540 = vld [vmem:[%s1 + $0x14] sm:$0xf]
      %v541 = vld [vmem:[%s1 + $0x18] sm:$0xf]
      %v542 = vld [vmem:[%s1 + $0x1c] sm:$0xf]
      %v543 = vld [vmem:[%s1 + $0x20] sm:$0xf]
      %v544 = vld [vmem:[%s1 + $0x24] sm:$0xf]
      %v545 = vld [vmem:[%s1 + $0x28] sm:$0xf]
      %v546 = vld [vmem:[%s1 + $0x2c] sm:$0xf]
      %v547 = vld [vmem:[%s1 + $0x30] sm:$0xf]
      %v548 = vld [vmem:[%s1 + $0x34] sm:$0xf]
      %v549 = vld [vmem:[%s1 + $0x38] sm:$0xf]
      %v550 = vld [vmem:[%s1 + $0x3c] sm:$0xf]
      %v551 = vld [vmem:[%s1 + $0x40] sm:$0xf]
      %v552 = vld [vmem:[%s1 + $0x44] sm:$0xf]
      %v553 = vld [vmem:[%s1 + $0x48] sm:$0xf]
      %v554 = vld [vmem:[%s1 + $0x4c] sm:$0xf]
      %v555 = vld [vmem:[%s1 + $0x50] sm:$0xf]
      %v556 = vld [vmem:[%s1 + $0x54] sm:$0xf]
      %v557 = vld [vmem:[%s1 + $0x58] sm:$0xf]
      %v558 = vld [vmem:[%s1 + $0x5c] sm:$0xf]
      %v559 = vld [vmem:[%s1 + $0x60] sm:$0xf]
      %v560 = vld [vmem:[%s1 + $0x64] sm:$0xf]
      %v561 = vld [vmem:[%s1 + $0x68] sm:$0xf]
      %v562 = vld [vmem:[%s1 + $0x6c] sm:$0xf]
      %v563 = vld [vmem:[%s1 + $0x70] sm:$0xf]
      %v564 = vld [vmem:[%s1 + $0x74] sm:$0xf]
      %v565 = vld [vmem:[%s1 + $0x78] sm:$0xf]
      %v566 = vld [vmem:[%s1 + $0x7c] sm:$0xf]
      %v567 = vld [vmem:[%s1 + $0x80] sm:$0xf]
      %v568 = vld [vmem:[%s1 + $0x84] sm:$0xf]
      %v569 = vld [vmem:[%s1 + $0x88] sm:$0xf]
      %v570 = vld [vmem:[%s1 + $0x8c] sm:$0xf]
      %v571 = vld [vmem:[%s1 + $0x90] sm:$0xf]
      %v572 = vld [vmem:[%s1 + $0x94] sm:$0xf]
      %v573 = vld [vmem:[%s1 + $0x98] sm:$0xf]
      %v574 = vld [vmem:[%s1 + $0x9c] sm:$0xf]
      %v575 = vld [vmem:[%s1 + $0xa0] sm:$0xf]
      %v576 = vld [vmem:[%s1 + $0xa4] sm:$0xf]
      %v577 = vld [vmem:[%s1 + $0xa8] sm:$0xf]
      %v578 = vld [vmem:[%s1 + $0xac] sm:$0xf]
      %v579 = vld [vmem:[%s1 + $0xb0] sm:$0xf]
      %v580 = vld [vmem:[%s1 + $0xb4] sm:$0xf]
      %v581 = vld [vmem:[%s1 + $0xb8] sm:$0xf]
      %v582 = vld [vmem:[%s1 + $0xbc] sm:$0xf]
      %v583 = vld [vmem:[%s1 + $0xc0] sm:$0xf]
      %v584 = vld [vmem:[%s1 + $0xc4] sm:$0xf]
      %v585 = vld [vmem:[%s1 + $0xc8] sm:$0xf]
      %v586 = vld [vmem:[%s1 + $0xcc] sm:$0xf]
      %v587 = vld [vmem:[%s1 + $0xd0] sm:$0xf]
      %v588 = vld [vmem:[%s1 + $0xd4] sm:$0xf]
      %v589 = vld [vmem:[%s1 + $0xd8] sm:$0xf]
      %v590 = vld [vmem:[%s1 + $0xdc] sm:$0xf]
      %v591 = vld [vmem:[%s1 + $0xe0] sm:$0xf]
      %v592 = vld [vmem:[%s1 + $0xe4] sm:$0xf]
      %v593 = vld [vmem:[%s1 + $0xe8] sm:$0xf]
      %v594 = vld [vmem:[%s1 + $0xec] sm:$0xf]
      %v595 = vld [vmem:[%s1 + $0xf0] sm:$0xf]
      %v596 = vld [vmem:[%s1 + $0xf4] sm:$0xf]
      %v597 = vld [vmem:[%s1 + $0xf8] sm:$0xf]
      %v598 = vld [vmem:[%s1 + $0xfc] sm:$0xf]
      %v599 = vpack.c.bf16 %v531, %v527
      %v600 = vpack.c.bf16 %v532, %v528
      %v601 = vpack.c.bf16 %v533, %v529
      %v602 = vpack.c.bf16 %v534, %v530
      %v667 = vunpack.c.l.b16 %v535
      %v668 = vunpack.c.l.b16 %v536
      %v669 = vunpack.c.l.b16 %v537
      %v670 = vunpack.c.l.b16 %v538
      %v671 = vunpack.c.l.b16 %v539
      %v672 = vunpack.c.l.b16 %v540
      %v673 = vunpack.c.l.b16 %v541
      %v674 = vunpack.c.l.b16 %v542
      %v675 = vunpack.c.l.b16 %v543
      %v676 = vunpack.c.l.b16 %v544
      %v677 = vunpack.c.l.b16 %v545
      %v678 = vunpack.c.l.b16 %v546
      %v679 = vunpack.c.l.b16 %v547
      %v680 = vunpack.c.l.b16 %v548
      %v681 = vunpack.c.l.b16 %v549
      %v682 = vunpack.c.l.b16 %v550
      %v683 = vunpack.c.l.b16 %v551
      %v684 = vunpack.c.l.b16 %v552
      %v685 = vunpack.c.l.b16 %v553
      %v686 = vunpack.c.l.b16 %v554
      %v687 = vunpack.c.l.b16 %v555
      %v688 = vunpack.c.l.b16 %v556
      %v689 = vunpack.c.l.b16 %v557
      %v690 = vunpack.c.l.b16 %v558
      %v691 = vunpack.c.l.b16 %v559
      %v692 = vunpack.c.l.b16 %v560
      %v693 = vunpack.c.l.b16 %v561
      %v694 = vunpack.c.l.b16 %v562
      %v695 = vunpack.c.l.b16 %v563
      %v696 = vunpack.c.l.b16 %v564
      %v697 = vunpack.c.l.b16 %v565
      %v698 = vunpack.c.l.b16 %v566
      %v699 = vunpack.c.l.b16 %v567
      %v700 = vunpack.c.l.b16 %v568
      %v701 = vunpack.c.l.b16 %v569
      %v702 = vunpack.c.l.b16 %v570
      %v703 = vunpack.c.l.b16 %v571
      %v704 = vunpack.c.l.b16 %v572
      %v705 = vunpack.c.l.b16 %v573
      %v706 = vunpack.c.l.b16 %v574
      %v707 = vunpack.c.l.b16 %v575
      %v708 = vunpack.c.l.b16 %v576
      %v709 = vunpack.c.l.b16 %v577
      %v710 = vunpack.c.l.b16 %v578
      %v711 = vunpack.c.l.b16 %v579
      %v712 = vunpack.c.l.b16 %v580
      %v713 = vunpack.c.l.b16 %v581
      %v714 = vunpack.c.l.b16 %v582
      %v715 = vunpack.c.l.b16 %v583
      %v716 = vunpack.c.l.b16 %v584
      %v717 = vunpack.c.l.b16 %v585
      %v718 = vunpack.c.l.b16 %v586
      %v719 = vunpack.c.l.b16 %v587
      %v720 = vunpack.c.l.b16 %v588
      %v721 = vunpack.c.l.b16 %v589
      %v722 = vunpack.c.l.b16 %v590
      %v723 = vunpack.c.l.b16 %v591
      %v724 = vunpack.c.l.b16 %v592
      %v725 = vunpack.c.l.b16 %v593
      %v726 = vunpack.c.l.b16 %v594
      %v727 = vunpack.c.l.b16 %v595
      %v728 = vunpack.c.l.b16 %v596
      %v729 = vunpack.c.l.b16 %v597
      %v730 = vunpack.c.l.b16 %v598
      %v731 = vpack.c.b16 %v668, %v667
      %v732 = vpack.c.b16 %v670, %v669
      %v733 = vpack.c.b16 %v672, %v671
      %v734 = vpack.c.b16 %v674, %v673
      %v735 = vpack.c.b16 %v676, %v675
      %v736 = vpack.c.b16 %v678, %v677
      %v737 = vpack.c.b16 %v680, %v679
      %v738 = vpack.c.b16 %v682, %v681
      %v739 = vpack.c.b16 %v684, %v683
      %v740 = vpack.c.b16 %v686, %v685
      %v741 = vpack.c.b16 %v688, %v687
      %v742 = vpack.c.b16 %v690, %v689
      %v743 = vpack.c.b16 %v692, %v691
      %v744 = vpack.c.b16 %v694, %v693
      %v745 = vpack.c.b16 %v696, %v695
      %v746 = vpack.c.b16 %v698, %v697
      %v747 = vpack.c.b16 %v700, %v699
      %v748 = vpack.c.b16 %v702, %v701
      %v749 = vpack.c.b16 %v704, %v703
      %v750 = vpack.c.b16 %v706, %v705
      %v751 = vpack.c.b16 %v708, %v707
      %v752 = vpack.c.b16 %v710, %v709
      %v753 = vpack.c.b16 %v712, %v711
      %v754 = vpack.c.b16 %v714, %v713
      %v755 = vpack.c.b16 %v716, %v715
      %v756 = vpack.c.b16 %v718, %v717
      %v757 = vpack.c.b16 %v720, %v719
      %v758 = vpack.c.b16 %v722, %v721
      %v759 = vpack.c.b16 %v724, %v723
      %v760 = vpack.c.b16 %v726, %v725
      %v761 = vpack.c.b16 %v728, %v727
      %v762 = vpack.c.b16 %v730, %v729
      %795 = vmatprep.subr.bf16.mxu0 0
      %796 = vmatpush1.bf16.msra.mxu0 %v731
      %797 = vmatprep.subr.bf16.mxu0 0
      %798 = vmatpush1.bf16.msra.mxu0 %v732
      %799 = vmatprep.subr.bf16.mxu0 0
      %800 = vmatpush1.bf16.msra.mxu0 %v733
      %801 = vmatprep.subr.bf16.mxu0 0
      %802 = vmatpush1.bf16.msra.mxu0 %v734
      %803 = vmatprep.subr.bf16.mxu0 0
      %804 = vmatpush1.bf16.msra.mxu0 %v735
      %805 = vmatprep.subr.bf16.mxu0 0
      %806 = vmatpush1.bf16.msra.mxu0 %v736
      %807 = vmatprep.subr.bf16.mxu0 0
      %808 = vmatpush1.bf16.msra.mxu0 %v737
      %809 = vmatprep.subr.bf16.mxu0 0
      %810 = vmatpush1.bf16.msra.mxu0 %v738
      %811 = vmatprep.subr.bf16.mxu0 0
      %812 = vmatpush1.bf16.msra.mxu0 %v739
      %813 = vmatprep.subr.bf16.mxu0 0
      %814 = vmatpush1.bf16.msra.mxu0 %v740
      %815 = vmatprep.subr.bf16.mxu0 0
      %816 = vmatpush1.bf16.msra.mxu0 %v741
      %817 = vmatprep.subr.bf16.mxu0 0
      %818 = vmatpush1.bf16.msra.mxu0 %v742
      %819 = vmatprep.subr.bf16.mxu0 0
      %820 = vmatpush1.bf16.msra.mxu0 %v743
      %821 = vmatprep.subr.bf16.mxu0 0
      %822 = vmatpush1.bf16.msra.mxu0 %v744
      %823 = vmatprep.subr.bf16.mxu0 0
      %824 = vmatpush1.bf16.msra.mxu0 %v745
      %825 = vmatprep.subr.bf16.mxu0 0
      %826 = vmatpush1.bf16.msra.mxu0 %v746
      %827 = vmatprep.mubr.bf16.mxu0 %v600
      %828 = vmatmul.mubr.bf16.gmra.mrb[0].mxu0 %v599
      %v829 = vpop.f32.mrb[0].mxu0
      %v830 = vadd.f32 0.0, %v829
      %v831 = vpop.f32.mrb[0].mxu0
      %v832 = vpop.f32.mrb[0].mxu0
      %v833 = vadd.f32 0.0, %v832
      %v834 = vpop.f32.mrb[0].mxu0
      %835 = vdwg.mxu0
      %836 = vmatprep.subr.bf16.mxu0 0
      %837 = vmatpush1.bf16.msra.mxu0 %v747
      %838 = vmatprep.subr.bf16.mxu0 0
      %839 = vmatpush1.bf16.msra.mxu0 %v748
      %840 = vmatprep.subr.bf16.mxu0 0
      %841 = vmatpush1.bf16.msra.mxu0 %v749
      %842 = vmatprep.subr.bf16.mxu0 0
      %843 = vmatpush1.bf16.msra.mxu0 %v750
      %844 = vmatprep.subr.bf16.mxu0 0
      %845 = vmatpush1.bf16.msra.mxu0 %v751
      %846 = vmatprep.subr.bf16.mxu0 0
      %847 = vmatpush1.bf16.msra.mxu0 %v752
      %848 = vmatprep.subr.bf16.mxu0 0
      %849 = vmatpush1.bf16.msra.mxu0 %v753
      %850 = vmatprep.subr.bf16.mxu0 0
      %851 = vmatpush1.bf16.msra.mxu0 %v754
      %852 = vmatprep.subr.bf16.mxu0 0
      %853 = vmatpush1.bf16.msra.mxu0 %v755
      %854 = vmatprep.subr.bf16.mxu0 0
      %855 = vmatpush1.bf16.msra.mxu0 %v756
      %856 = vmatprep.subr.bf16.mxu0 0
      %857 = vmatpush1.bf16.msra.mxu0 %v757
      %858 = vmatprep.subr.bf16.mxu0 0
      %859 = vmatpush1.bf16.msra.mxu0 %v758
      %860 = vmatprep.subr.bf16.mxu0 0
      %861 = vmatpush1.bf16.msra.mxu0 %v759
      %862 = vmatprep.subr.bf16.mxu0 0
      %863 = vmatpush1.bf16.msra.mxu0 %v760
      %864 = vmatprep.subr.bf16.mxu0 0
      %865 = vmatpush1.bf16.msra.mxu0 %v761
      %866 = vmatprep.subr.bf16.mxu0 0
      %867 = vmatpush1.bf16.msra.mxu0 %v762
      %868 = vmatprep.mubr.bf16.mxu0 %v602
      %869 = vmatmul.mubr.bf16.gmra.mrb[0].mxu0 %v601
      %v870 = vpop.f32.mrb[0].mxu0
      %v871 = vadd.f32 %v830, %v870
      %v872 = vpop.f32.mrb[0].mxu0
      %v873 = vpop.f32.mrb[0].mxu0
      %v874 = vadd.f32 %v833, %v873
      %v875 = vpop.f32.mrb[0].mxu0
      %876 = vdwg.mxu0
      %v877 = vld [vmem:[%s2] sm:$0xf]
      %v878 = vld [vmem:[%s2 + $0x4] sm:$0xf]
      %v879 = vld [vmem:[%s2 + $0x8] sm:$0xf]
      %v880 = vld [vmem:[%s2 + $0xc] sm:$0xf]
      %v881 = vld [vmem:[%s2 + $0x10] sm:$0xf]
      %v882 = vld [vmem:[%s2 + $0x14] sm:$0xf]
      %v883 = vld [vmem:[%s2 + $0x18] sm:$0xf]
      %v884 = vld [vmem:[%s2 + $0x1c] sm:$0xf]
      %v885 = vld [vmem:[%s2 + $0x20] sm:$0xf]
      %v886 = vld [vmem:[%s2 + $0x24] sm:$0xf]
      %v887 = vld [vmem:[%s2 + $0x28] sm:$0xf]
      %v888 = vld [vmem:[%s2 + $0x2c] sm:$0xf]
      %v889 = vld [vmem:[%s2 + $0x30] sm:$0xf]
      %v890 = vld [vmem:[%s2 + $0x34] sm:$0xf]
      %v891 = vld [vmem:[%s2 + $0x38] sm:$0xf]
      %v892 = vld [vmem:[%s2 + $0x3c] sm:$0xf]
      %v893 = vpack.c.bf16 %v874, %v871
      %v910 = vunpack.c.l.b16 %v877
      %v911 = vunpack.c.l.b16 %v878
      %v912 = vunpack.c.l.b16 %v879
      %v913 = vunpack.c.l.b16 %v880
      %v914 = vunpack.c.l.b16 %v881
      %v915 = vunpack.c.l.b16 %v882
      %v916 = vunpack.c.l.b16 %v883
      %v917 = vunpack.c.l.b16 %v884
      %v918 = vunpack.c.l.b16 %v885
      %v919 = vunpack.c.l.b16 %v886
      %v920 = vunpack.c.l.b16 %v887
      %v921 = vunpack.c.l.b16 %v888
      %v922 = vunpack.c.l.b16 %v889
      %v923 = vunpack.c.l.b16 %v890
      %v924 = vunpack.c.l.b16 %v891
      %v925 = vunpack.c.l.b16 %v892
      %v926 = vpack.c.b16 %v911, %v910
      %v927 = vpack.c.b16 %v913, %v912
      %v928 = vpack.c.b16 %v915, %v914
      %v929 = vpack.c.b16 %v917, %v916
      %v930 = vpack.c.b16 %v919, %v918
      %v931 = vpack.c.b16 %v921, %v920
      %v932 = vpack.c.b16 %v923, %v922
      %v933 = vpack.c.b16 %v925, %v924
      %942 = vmatprep.subr.bf16.mxu0 0
      %943 = vmatpush1.bf16.msra.mxu0 %v926
      %944 = vmatprep.subr.bf16.mxu0 0
      %945 = vmatpush1.bf16.msra.mxu0 %v927
      %946 = vmatprep.subr.bf16.mxu0 0
      %947 = vmatpush1.bf16.msra.mxu0 %v928
      %948 = vmatprep.subr.bf16.mxu0 0
      %949 = vmatpush1.bf16.msra.mxu0 %v929
      %950 = vmatprep.subr.bf16.mxu0 0
      %951 = vmatpush1.bf16.msra.mxu0 %v930
      %952 = vmatprep.subr.bf16.mxu0 0
      %953 = vmatpush1.bf16.msra.mxu0 %v931
      %954 = vmatprep.subr.bf16.mxu0 0
      %955 = vmatpush1.bf16.msra.mxu0 %v932
      %956 = vmatprep.subr.bf16.mxu0 0
      %957 = vmatpush1.bf16.msra.mxu0 %v933
      %958 = vmatprep.subr.bf16.mxu0 0
      %959 = vmatpush1.bf16.msra.mxu0 0
      %960 = vmatprep.subr.bf16.mxu0 0
      %961 = vmatpush1.bf16.msra.mxu0 0
      %962 = vmatprep.subr.bf16.mxu0 0
      %963 = vmatpush1.bf16.msra.mxu0 0
      %964 = vmatprep.subr.bf16.mxu0 0
      %965 = vmatpush1.bf16.msra.mxu0 0
      %966 = vmatprep.subr.bf16.mxu0 0
      %967 = vmatpush1.bf16.msra.mxu0 0
      %968 = vmatprep.subr.bf16.mxu0 0
      %969 = vmatpush1.bf16.msra.mxu0 0
      %970 = vmatprep.subr.bf16.mxu0 0
      %971 = vmatpush1.bf16.msra.mxu0 0
      %972 = vmatprep.subr.bf16.mxu0 0
      %973 = vmatpush1.bf16.msra.mxu0 0
      %974 = vmatprep.mubr.bf16.mxu0 0
      %975 = vmatmul.mubr.bf16.gmra.mrb[0].mxu0 %v893
      %v976 = vpop.f32.mrb[0].mxu0
      %v977 = vadd.f32 0.0, %v976
      %v978 = vpop.f32.mrb[0].mxu0
      %v979 = vpop.f32.mrb[0].mxu0
      %v980 = vadd.f32 0.0, %v979
      %v981 = vpop.f32.mrb[0].mxu0
      %982 = vdwg.mxu0
      %v983 = vld [vmem:[%s3] sm:$0xf]
      %v984 = vld [vmem:[%s3 + $0x4] sm:$0xf]
      %v985 = vld [vmem:[%s3 + $0x8] sm:$0xf]
      %v986 = vld [vmem:[%s3 + $0xc] sm:$0xf]
      %v987 = vld [vmem:[%s3 + $0x10] sm:$0xf]
      %v988 = vld [vmem:[%s3 + $0x14] sm:$0xf]
      %v989 = vld [vmem:[%s3 + $0x18] sm:$0xf]
      %v990 = vld [vmem:[%s3 + $0x1c] sm:$0xf]
      %v991 = vld [vmem:[%s3 + $0x20] sm:$0xf]
      %v992 = vld [vmem:[%s3 + $0x24] sm:$0xf]
      %v993 = vld [vmem:[%s3 + $0x28] sm:$0xf]
      %v994 = vld [vmem:[%s3 + $0x2c] sm:$0xf]
      %v995 = vld [vmem:[%s3 + $0x30] sm:$0xf]
      %v996 = vld [vmem:[%s3 + $0x34] sm:$0xf]
      %v997 = vld [vmem:[%s3 + $0x38] sm:$0xf]
      %v998 = vld [vmem:[%s3 + $0x3c] sm:$0xf]
      %v1015 = vunpack.c.l.b16 %v983
      %v1016 = vunpack.c.l.b16 %v984
      %v1017 = vunpack.c.l.b16 %v985
      %v1018 = vunpack.c.l.b16 %v986
      %v1019 = vunpack.c.l.b16 %v987
      %v1020 = vunpack.c.l.b16 %v988
      %v1021 = vunpack.c.l.b16 %v989
      %v1022 = vunpack.c.l.b16 %v990
      %v1023 = vunpack.c.l.b16 %v991
      %v1024 = vunpack.c.l.b16 %v992
      %v1025 = vunpack.c.l.b16 %v993
      %v1026 = vunpack.c.l.b16 %v994
      %v1027 = vunpack.c.l.b16 %v995
      %v1028 = vunpack.c.l.b16 %v996
      %v1029 = vunpack.c.l.b16 %v997
      %v1030 = vunpack.c.l.b16 %v998
      %v1031 = vpack.c.b16 %v1016, %v1015
      %v1032 = vpack.c.b16 %v1018, %v1017
      %v1033 = vpack.c.b16 %v1020, %v1019
      %v1034 = vpack.c.b16 %v1022, %v1021
      %v1035 = vpack.c.b16 %v1024, %v1023
      %v1036 = vpack.c.b16 %v1026, %v1025
      %v1037 = vpack.c.b16 %v1028, %v1027
      %v1038 = vpack.c.b16 %v1030, %v1029
      %1047 = vmatprep.subr.bf16.mxu0 0
      %1048 = vmatpush1.bf16.msra.mxu0 %v1031
      %1049 = vmatprep.subr.bf16.mxu0 0
      %1050 = vmatpush1.bf16.msra.mxu0 %v1032
      %1051 = vmatprep.subr.bf16.mxu0 0
      %1052 = vmatpush1.bf16.msra.mxu0 %v1033
      %1053 = vmatprep.subr.bf16.mxu0 0
      %1054 = vmatpush1.bf16.msra.mxu0 %v1034
      %1055 = vmatprep.subr.bf16.mxu0 0
      %1056 = vmatpush1.bf16.msra.mxu0 %v1035
      %1057 = vmatprep.subr.bf16.mxu0 0
      %1058 = vmatpush1.bf16.msra.mxu0 %v1036
      %1059 = vmatprep.subr.bf16.mxu0 0
      %1060 = vmatpush1.bf16.msra.mxu0 %v1037
      %1061 = vmatprep.subr.bf16.mxu0 0
      %1062 = vmatpush1.bf16.msra.mxu0 %v1038
      %1063 = vmatprep.subr.bf16.mxu0 0
      %1064 = vmatpush1.bf16.msra.mxu0 0
      %1065 = vmatprep.subr.bf16.mxu0 0
      %1066 = vmatpush1.bf16.msra.mxu0 0
      %1067 = vmatprep.subr.bf16.mxu0 0
      %1068 = vmatpush1.bf16.msra.mxu0 0
      %1069 = vmatprep.subr.bf16.mxu0 0
      %1070 = vmatpush1.bf16.msra.mxu0 0
      %1071 = vmatprep.subr.bf16.mxu0 0
      %1072 = vmatpush1.bf16.msra.mxu0 0
      %1073 = vmatprep.subr.bf16.mxu0 0
      %1074 = vmatpush1.bf16.msra.mxu0 0
      %1075 = vmatprep.subr.bf16.mxu0 0
      %1076 = vmatpush1.bf16.msra.mxu0 0
      %1077 = vmatprep.subr.bf16.mxu0 0
      %1078 = vmatpush1.bf16.msra.mxu0 0
      %1079 = vmatprep.mubr.bf16.mxu0 0
      %1080 = vmatmul.mubr.bf16.gmra.mrb[0].mxu0 %v893
      %v1081 = vpop.f32.mrb[0].mxu0
      %v1082 = vadd.f32 0.0, %v1081
      %v1083 = vpop.f32.mrb[0].mxu0
      %v1084 = vpop.f32.mrb[0].mxu0
      %v1085 = vadd.f32 0.0, %v1084
      %v1086 = vpop.f32.mrb[0].mxu0
      %1087 = vdwg.mxu0
      %v1088 = vsub.f32 0.0, %v1082
      %v1089 = vsub.f32 0.0, %v1085
      %v1090 = vpack.c.bf16 %v980, %v977
      %v1091 = vpack.c.bf16 %v1089, %v1088
      %v1094 = vunpack.c.l.b16 %v525
      %v1095 = vunpack.c.l.b16 %v526
      %v1096 = vpack.c.b16 %v1095, %v1094
      %vm1097 = vcmask 130048
      %v1099 = vsel %vm1097, %v1096, 0
      %1101 = vmatprep.subr.bf16.mxu0 0
      %1102 = vmatpush1.bf16.msra.mxu0 %v1091
      %1103 = vmatprep.subr.bf16.mxu0 0
      %1104 = vmatpush1.bf16.msra.mxu0 0
      %1105 = vmatprep.subr.bf16.mxu0 0
      %1106 = vmatpush1.bf16.msra.mxu0 0
      %1107 = vmatprep.subr.bf16.mxu0 0
      %1108 = vmatpush1.bf16.msra.mxu0 0
      %1109 = vmatprep.subr.bf16.mxu0 0
      %1110 = vmatpush1.bf16.msra.mxu0 0
      %1111 = vmatprep.subr.bf16.mxu0 0
      %1112 = vmatpush1.bf16.msra.mxu0 0
      %1113 = vmatprep.subr.bf16.mxu0 0
      %1114 = vmatpush1.bf16.msra.mxu0 0
      %1115 = vmatprep.subr.bf16.mxu0 0
      %1116 = vmatpush1.bf16.msra.mxu0 0
      %1117 = vmatprep.subr.bf16.mxu0 0
      %1118 = vmatpush1.bf16.msra.mxu0 0
      %1119 = vmatprep.subr.bf16.mxu0 0
      %1120 = vmatpush1.bf16.msra.mxu0 0
      %1121 = vmatprep.subr.bf16.mxu0 0
      %1122 = vmatpush1.bf16.msra.mxu0 0
      %1123 = vmatprep.subr.bf16.mxu0 0
      %1124 = vmatpush1.bf16.msra.mxu0 0
      %1125 = vmatprep.subr.bf16.mxu0 0
      %1126 = vmatpush1.bf16.msra.mxu0 0
      %1127 = vmatprep.subr.bf16.mxu0 0
      %1128 = vmatpush1.bf16.msra.mxu0 0
      %1129 = vmatprep.subr.bf16.mxu0 0
      %1130 = vmatpush1.bf16.msra.mxu0 0
      %1131 = vmatprep.subr.bf16.mxu0 0
      %1132 = vmatpush1.bf16.msra.mxu0 0
      %1133 = vmatprep.mubr.bf16.mxu0 0
      %1134 = vmatmul.mubr.bf16.gmra.mrb[0].mxu0 %v1099
      %v1135 = vpop.f32.mrb[0].mxu0
      %v1136 = vadd.f32 0.0, %v1135
      %v1137 = vpop.f32.mrb[0].mxu0
      %v1138 = vpop.f32.mrb[0].mxu0
      %v1139 = vadd.f32 0.0, %v1138
      %v1140 = vpop.f32.mrb[0].mxu0
      %1141 = vdwg.mxu0
      %v1144 = vunpack.c.l.b16 %v523
      %v1145 = vunpack.c.l.b16 %v524
      %v1146 = vpack.c.b16 %v1145, %v1144
      %v1148 = vsel %vm1097, %v1146, 0
      %1150 = vmatprep.subr.bf16.mxu0 0
      %1151 = vmatpush1.bf16.msra.mxu0 %v1090
      %1152 = vmatprep.subr.bf16.mxu0 0
      %1153 = vmatpush1.bf16.msra.mxu0 0
      %1154 = vmatprep.subr.bf16.mxu0 0
      %1155 = vmatpush1.bf16.msra.mxu0 0
      %1156 = vmatprep.subr.bf16.mxu0 0
      %1157 = vmatpush1.bf16.msra.mxu0 0
      %1158 = vmatprep.subr.bf16.mxu0 0
      %1159 = vmatpush1.bf16.msra.mxu0 0
      %1160 = vmatprep.subr.bf16.mxu0 0
      %1161 = vmatpush1.bf16.msra.mxu0 0
      %1162 = vmatprep.subr.bf16.mxu0 0
      %1163 = vmatpush1.bf16.msra.mxu0 0
      %1164 = vmatprep.subr.bf16.mxu0 0
      %1165 = vmatpush1.bf16.msra.mxu0 0
      %1166 = vmatprep.subr.bf16.mxu0 0
      %1167 = vmatpush1.bf16.msra.mxu0 0
      %1168 = vmatprep.subr.bf16.mxu0 0
      %1169 = vmatpush1.bf16.msra.mxu0 0
      %1170 = vmatprep.subr.bf16.mxu0 0
      %1171 = vmatpush1.bf16.msra.mxu0 0
      %1172 = vmatprep.subr.bf16.mxu0 0
      %1173 = vmatpush1.bf16.msra.mxu0 0
      %1174 = vmatprep.subr.bf16.mxu0 0
      %1175 = vmatpush1.bf16.msra.mxu0 0
      %1176 = vmatprep.subr.bf16.mxu0 0
      %1177 = vmatpush1.bf16.msra.mxu0 0
      %1178 = vmatprep.subr.bf16.mxu0 0
      %1179 = vmatpush1.bf16.msra.mxu0 0
      %1180 = vmatprep.subr.bf16.mxu0 0
      %1181 = vmatpush1.bf16.msra.mxu0 0
      %1182 = vmatprep.mubr.bf16.mxu0 0
      %1183 = vmatmul.mubr.bf16.gmra.mrb[0].mxu0 %v1148
      %v1184 = vpop.f32.mrb[0].mxu0
      %v1185 = vadd.f32 %v1136, %v1184
      %v1186 = vpop.f32.mrb[0].mxu0
      %v1187 = vpop.f32.mrb[0].mxu0
      %v1188 = vadd.f32 %v1139, %v1187
      %v1189 = vpop.f32.mrb[0].mxu0
      %1190 = vdwg.mxu0
      %1191 = vmatprep.subr.bf16.mxu0 0
      %1192 = vmatpush1.bf16.msra.mxu0 %v1091
      %1193 = vmatprep.subr.bf16.mxu0 0
      %1194 = vmatpush1.bf16.msra.mxu0 0
      %1195 = vmatprep.subr.bf16.mxu0 0
      %1196 = vmatpush1.bf16.msra.mxu0 0
      %1197 = vmatprep.subr.bf16.mxu0 0
      %1198 = vmatpush1.bf16.msra.mxu0 0
      %1199 = vmatprep.subr.bf16.mxu0 0
      %1200 = vmatpush1.bf16.msra.mxu0 0
      %1201 = vmatprep.subr.bf16.mxu0 0
      %1202 = vmatpush1.bf16.msra.mxu0 0
      %1203 = vmatprep.subr.bf16.mxu0 0
      %1204 = vmatpush1.bf16.msra.mxu0 0
      %1205 = vmatprep.subr.bf16.mxu0 0
      %1206 = vmatpush1.bf16.msra.mxu0 0
      %1207 = vmatprep.subr.bf16.mxu0 0
      %1208 = vmatpush1.bf16.msra.mxu0 0
      %1209 = vmatprep.subr.bf16.mxu0 0
      %1210 = vmatpush1.bf16.msra.mxu0 0
      %1211 = vmatprep.subr.bf16.mxu0 0
      %1212 = vmatpush1.bf16.msra.mxu0 0
      %1213 = vmatprep.subr.bf16.mxu0 0
      %1214 = vmatpush1.bf16.msra.mxu0 0
      %1215 = vmatprep.subr.bf16.mxu0 0
      %1216 = vmatpush1.bf16.msra.mxu0 0
      %1217 = vmatprep.subr.bf16.mxu0 0
      %1218 = vmatpush1.bf16.msra.mxu0 0
      %1219 = vmatprep.subr.bf16.mxu0 0
      %1220 = vmatpush1.bf16.msra.mxu0 0
      %1221 = vmatprep.subr.bf16.mxu0 0
      %1222 = vmatpush1.bf16.msra.mxu0 0
      %1223 = vmatprep.mubr.bf16.mxu0 0
      %1224 = vmatmul.mubr.bf16.gmra.mrb[0].mxu0 %v1148
      %v1225 = vpop.f32.mrb[0].mxu0
      %v1226 = vadd.f32 0.0, %v1225
      %v1227 = vpop.f32.mrb[0].mxu0
      %v1228 = vpop.f32.mrb[0].mxu0
      %v1229 = vadd.f32 0.0, %v1228
      %v1230 = vpop.f32.mrb[0].mxu0
      %1231 = vdwg.mxu0
      %1232 = vmatprep.subr.bf16.mxu0 0
      %1233 = vmatpush1.bf16.msra.mxu0 %v1090
      %1234 = vmatprep.subr.bf16.mxu0 0
      %1235 = vmatpush1.bf16.msra.mxu0 0
      %1236 = vmatprep.subr.bf16.mxu0 0
      %1237 = vmatpush1.bf16.msra.mxu0 0
      %1238 = vmatprep.subr.bf16.mxu0 0
      %1239 = vmatpush1.bf16.msra.mxu0 0
      %1240 = vmatprep.subr.bf16.mxu0 0
      %1241 = vmatpush1.bf16.msra.mxu0 0
      %1242 = vmatprep.subr.bf16.mxu0 0
      %1243 = vmatpush1.bf16.msra.mxu0 0
      %1244 = vmatprep.subr.bf16.mxu0 0
      %1245 = vmatpush1.bf16.msra.mxu0 0
      %1246 = vmatprep.subr.bf16.mxu0 0
      %1247 = vmatpush1.bf16.msra.mxu0 0
      %1248 = vmatprep.subr.bf16.mxu0 0
      %1249 = vmatpush1.bf16.msra.mxu0 0
      %1250 = vmatprep.subr.bf16.mxu0 0
      %1251 = vmatpush1.bf16.msra.mxu0 0
      %1252 = vmatprep.subr.bf16.mxu0 0
      %1253 = vmatpush1.bf16.msra.mxu0 0
      %1254 = vmatprep.subr.bf16.mxu0 0
      %1255 = vmatpush1.bf16.msra.mxu0 0
      %1256 = vmatprep.subr.bf16.mxu0 0
      %1257 = vmatpush1.bf16.msra.mxu0 0
      %1258 = vmatprep.subr.bf16.mxu0 0
      %1259 = vmatpush1.bf16.msra.mxu0 0
      %1260 = vmatprep.subr.bf16.mxu0 0
      %1261 = vmatpush1.bf16.msra.mxu0 0
      %1262 = vmatprep.subr.bf16.mxu0 0
      %1263 = vmatpush1.bf16.msra.mxu0 0
      %1264 = vmatprep.mubr.bf16.mxu0 0
      %1265 = vmatmul.mubr.bf16.gmra.mrb[0].mxu0 %v1099
      %v1266 = vpop.f32.mrb[0].mxu0
      %v1267 = vadd.f32 0.0, %v1266
      %v1268 = vpop.f32.mrb[0].mxu0
      %v1269 = vpop.f32.mrb[0].mxu0
      %v1270 = vadd.f32 0.0, %v1269
      %v1271 = vpop.f32.mrb[0].mxu0
      %1272 = vdwg.mxu0
      %v1273 = vsub.f32 %v1226, %v1267
      %v1274 = vsub.f32 %v1229, %v1270
      %v1275 = vmul.f32 %v1185, %v1185
      %v1276 = vmul.f32 %v1188, %v1188
      %v1277 = vmul.f32 %v1273, %v1273
      %v1278 = vmul.f32 %v1274, %v1274
      %v1279 = vadd.f32 %v1275, %v1277
      %v1280 = vadd.f32 %v1276, %v1278
      %v1281 = vrsqrt.pop %v1279
      %v1282 = vmul.f32 %v1279, %v1281
      %vm1283 = vcmp.eq.f32.partialorder %v1279, inf
      %v1284 = vsel %vm1283, %v1279, %v1282
      %vm1285 = vcmp.eq.f32.partialorder %v1279, 0.0
      %v1286 = vand.u32 %v1279, 2147483648
      %v1287 = vsel %vm1285, %v1286, %v1284
      %v1288 = vrsqrt.pop %v1280
      %v1289 = vmul.f32 %v1280, %v1288
      %vm1290 = vcmp.eq.f32.partialorder %v1280, inf
      %v1291 = vsel %vm1290, %v1280, %v1289
      %vm1292 = vcmp.eq.f32.partialorder %v1280, 0.0
      %v1293 = vand.u32 %v1280, 2147483648
      %v1294 = vsel %vm1292, %v1293, %v1291
      %v1295 = vand.u32 2147483647, %v1185
      %v1296 = vand.u32 2147483647, %v1188
      %v1297 = vand.u32 2147483647, %v1273
      %v1298 = vand.u32 2147483647, %v1274
      %v1299 = vmax.f32 %v1295, %v1297
      %v1300 = vmax.f32 %v1296, %v1298
      %v1301 = vmin.f32 %v1295, %v1297
      %v1302 = vmin.f32 %v1296, %v1298
      %v1303 = vmax.f32 %v1299, 1e-30
      %v1304 = vmax.f32 %v1300, 1e-30
      %v1305 = vrcp.pop %v1303
      %v1306 = vmul.f32 %v1301, %v1305
      %v1307 = vrcp.pop %v1304
      %v1308 = vmul.f32 %v1302, %v1307
      %v1309 = vmul.f32 %v1306, %v1306
      %v1310 = vmul.f32 %v1308, %v1308
      %v1311 = vmul.f32 %v1309, -0.0117212
      %v1312 = vmul.f32 %v1310, -0.0117212
      %v1313 = vadd.f32 %v1311, 0.05265332
      %v1314 = vadd.f32 %v1312, 0.05265332
      %v1315 = vmul.f32 %v1313, %v1309
      %v1316 = vmul.f32 %v1314, %v1310
      %v1317 = vadd.f32 %v1315, -0.11643287
      %v1318 = vadd.f32 %v1316, -0.11643287
      %v1319 = vmul.f32 %v1317, %v1309
      %v1320 = vmul.f32 %v1318, %v1310
      %v1321 = vadd.f32 %v1319, 0.19354346
      %v1322 = vadd.f32 %v1320, 0.19354346
      %v1323 = vmul.f32 %v1321, %v1309
      %v1324 = vmul.f32 %v1322, %v1310
      %v1325 = vadd.f32 %v1323, -0.33262348
      %v1326 = vadd.f32 %v1324, -0.33262348
      %v1327 = vmul.f32 %v1325, %v1309
      %v1328 = vmul.f32 %v1326, %v1310
      %v1329 = vadd.f32 %v1327, 0.99997723
      %v1330 = vadd.f32 %v1328, 0.99997723
      %v1331 = vmul.f32 %v1329, %v1306
      %v1332 = vmul.f32 %v1330, %v1308
      %vm1333 = vcmp.gt.f32.partialorder %v1297, %v1295
      %vm1334 = vcmp.gt.f32.partialorder %v1298, %v1296
      %v1335 = vsub.f32 1.5707964, %v1331
      %v1336 = vsub.f32 1.5707964, %v1332
      %v1337 = vsel %vm1333, %v1335, %v1331
      %v1338 = vsel %vm1334, %v1336, %v1332
      %vm1339 = vcmp.lt.f32.partialorder %v1185, 0.0
      %vm1340 = vcmp.lt.f32.partialorder %v1188, 0.0
      %v1341 = vsub.f32 3.1415927, %v1337
      %v1342 = vsub.f32 3.1415927, %v1338
      %v1343 = vsel %vm1339, %v1341, %v1337
      %v1344 = vsel %vm1340, %v1342, %v1338
      %vm1345 = vcmp.lt.f32.partialorder %v1273, 0.0
      %vm1346 = vcmp.lt.f32.partialorder %v1274, 0.0
      %v1347 = vsub.f32 0.0, %v1343
      %v1348 = vsub.f32 0.0, %v1344
      %v1349 = vsel %vm1345, %v1347, %v1343
      %v1350 = vsel %vm1346, %v1348, %v1344
      %v1351 = vld [vmem:[%s6] sm:$0xf]
      %v1352 = vld [vmem:[%s6 + $0x4] sm:$0xf]
      %v1353 = vld [vmem:[%s6 + $0x8] sm:$0xf]
      %v1354 = vld [vmem:[%s6 + $0xc] sm:$0xf]
      %v1355 = vld [vmem:[%s6 + $0x10] sm:$0xf]
      %v1356 = vld [vmem:[%s6 + $0x14] sm:$0xf]
      %v1357 = vld [vmem:[%s6 + $0x18] sm:$0xf]
      %v1358 = vld [vmem:[%s6 + $0x1c] sm:$0xf]
      %v1359 = vld [vmem:[%s6 + $0x20] sm:$0xf]
      %v1360 = vpack.c.bf16 %v1294, %v1287
      %v1361 = vld [vmem:[%s7] sm:$0x1]
      %v1363 = vlaneseq
      %v1364 = vshrl.u32 %v1363, 7
      %v1365 = vsub.s32 0, %v1364
      %v1366 = vrot.slane %v1361, %v1365
      %v1377 = vunpack.c.l.b16 %v1351
      %v1378 = vunpack.c.l.b16 %v1352
      %v1379 = vunpack.c.l.b16 %v1353
      %v1380 = vunpack.c.l.b16 %v1354
      %v1381 = vunpack.c.l.b16 %v1355
      %v1382 = vunpack.c.l.b16 %v1356
      %v1383 = vunpack.c.l.b16 %v1357
      %v1384 = vunpack.c.l.b16 %v1358
      %v1385 = vunpack.c.l.b16 %v1359
      %v1386 = vpack.c.b16 %v1378, %v1377
      %v1387 = vpack.c.b16 %v1380, %v1379
      %v1388 = vpack.c.b16 %v1382, %v1381
      %v1389 = vpack.c.b16 %v1384, %v1383
      %v1390 = vpack.c.b16 %v1385, %v1385
      %vm1395 = vcmask 588800
      %v1397 = vsel %vm1395, %v1360, 0
      %vm1399 = vcmask 1043456
      %v1401 = vsel %vm1399, %v1390, 0
      %1403 = vmatprep.subr.bf16.mxu0 0
      %1404 = vmatpush1.bf16.msra.mxu0 %v1386
      %1405 = vmatprep.subr.bf16.mxu0 0
      %1406 = vmatpush1.bf16.msra.mxu0 %v1387
      %1407 = vmatprep.subr.bf16.mxu0 0
      %1408 = vmatpush1.bf16.msra.mxu0 %v1388
      %1409 = vmatprep.subr.bf16.mxu0 0
      %1410 = vmatpush1.bf16.msra.mxu0 %v1389
      %1411 = vmatprep.subr.bf16.mxu0 0
      %1412 = vmatpush1.bf16.msra.mxu0 %v1401
      %1413 = vmatprep.subr.bf16.mxu0 0
      %1414 = vmatpush1.bf16.msra.mxu0 0
      %1415 = vmatprep.subr.bf16.mxu0 0
      %1416 = vmatpush1.bf16.msra.mxu0 0
      %1417 = vmatprep.subr.bf16.mxu0 0
      %1418 = vmatpush1.bf16.msra.mxu0 0
      %1419 = vmatprep.subr.bf16.mxu0 0
      %1420 = vmatpush1.bf16.msra.mxu0 0
      %1421 = vmatprep.subr.bf16.mxu0 0
      %1422 = vmatpush1.bf16.msra.mxu0 0
      %1423 = vmatprep.subr.bf16.mxu0 0
      %1424 = vmatpush1.bf16.msra.mxu0 0
      %1425 = vmatprep.subr.bf16.mxu0 0
      %1426 = vmatpush1.bf16.msra.mxu0 0
      %1427 = vmatprep.subr.bf16.mxu0 0
      %1428 = vmatpush1.bf16.msra.mxu0 0
      %1429 = vmatprep.subr.bf16.mxu0 0
      %1430 = vmatpush1.bf16.msra.mxu0 0
      %1431 = vmatprep.subr.bf16.mxu0 0
      %1432 = vmatpush1.bf16.msra.mxu0 0
      %1433 = vmatprep.subr.bf16.mxu0 0
      %1434 = vmatpush1.bf16.msra.mxu0 0
      %1435 = vmatprep.mubr.bf16.mxu0 0
      %1436 = vmatmul.mubr.bf16.gmra.mrb[0].mxu0 %v1397
      %v1437 = vpop.f32.mrb[0].mxu0
      %v1438 = vadd.f32 %v1366, %v1437
      %v1439 = vpop.f32.mrb[0].mxu0
      %v1440 = vpop.f32.mrb[0].mxu0
      %v1441 = vadd.f32 %v1366, %v1440
      %v1442 = vpop.f32.mrb[0].mxu0
      %1443 = vdwg.mxu0
      %v1444 = vsub.f32 %v1438, %v1287
      %v1445 = vsub.f32 %v1441, %v1294
      %v1446 = vld [vmem:[%s12] sm:$0xff]
      %v1447 = vld [vmem:[%s12 + $0x8] sm:$0xff]
      %v1448 = vld [vmem:[%s12 + $0x10] sm:$0xff]
      %v1449 = vld [vmem:[%s12 + $0x18] sm:$0xff]
      %v1450 = vld [vmem:[%s12 + $0x20] sm:$0xff]
      %v1451 = vld [vmem:[%s12 + $0x28] sm:$0xff]
      %v1452 = vld [vmem:[%s12 + $0x30] sm:$0xff]
      %v1453 = vld [vmem:[%s12 + $0x38] sm:$0xff]
      %v1454 = vld [vmem:[%s12 + $0x40] sm:$0xff]
      %v1456 = vsel %vm1395, %v1444, 0
      %v1459 = vsel %vm1395, %v1445, 0
      %1461 = vmatprep.subr.mxu0 0.0
      %1462 = vmatpush1.msra.mxu0 %v1446
      %1463 = vmatprep.subr.mxu0 0.0
      %1464 = vmatpush1.msra.mxu0 %v1447
      %1465 = vmatprep.subr.mxu0 0.0
      %1466 = vmatpush1.msra.mxu0 %v1448
      %1467 = vmatprep.subr.mxu0 0.0
      %1468 = vmatpush1.msra.mxu0 %v1449
      %1469 = vmatprep.subr.mxu0 0.0
      %1470 = vmatpush1.msra.mxu0 %v1450
      %1471 = vmatprep.subr.mxu0 0.0
      %1472 = vmatpush1.msra.mxu0 %v1451
      %1473 = vmatprep.subr.mxu0 0.0
      %1474 = vmatpush1.msra.mxu0 %v1452
      %1475 = vmatprep.subr.mxu0 0.0
      %1476 = vmatpush1.msra.mxu0 %v1453
      %1477 = vmatprep.subr.mxu0 0.0
      %1478 = vmatpush1.msra.mxu0 %v1454
      %1479 = vmatprep.subr.mxu0 0.0
      %1480 = vmatpush1.msra.mxu0 0.0
      %1481 = vmatprep.subr.mxu0 0.0
      %1482 = vmatpush1.msra.mxu0 0.0
      %1483 = vmatprep.subr.mxu0 0.0
      %1484 = vmatpush1.msra.mxu0 0.0
      %1485 = vmatprep.subr.mxu0 0.0
      %1486 = vmatpush1.msra.mxu0 0.0
      %1487 = vmatprep.subr.mxu0 0.0
      %1488 = vmatpush1.msra.mxu0 0.0
      %1489 = vmatprep.subr.mxu0 0.0
      %1490 = vmatpush1.msra.mxu0 0.0
      %1491 = vmatprep.subr.mxu0 0.0
      %1492 = vmatpush1.msra.mxu0 0.0
      %1493 = vmatprep.subr.mxu0 0.0
      %1494 = vmatpush1.msra.mxu0 0.0
      %1495 = vmatprep.subr.mxu0 0.0
      %1496 = vmatpush1.msra.mxu0 0.0
      %1497 = vmatprep.subr.mxu0 0.0
      %1498 = vmatpush1.msra.mxu0 0.0
      %1499 = vmatprep.subr.mxu0 0.0
      %1500 = vmatpush1.msra.mxu0 0.0
      %1501 = vmatprep.subr.mxu0 0.0
      %1502 = vmatpush1.msra.mxu0 0.0
      %1503 = vmatprep.subr.mxu0 0.0
      %1504 = vmatpush1.msra.mxu0 0.0
      %1505 = vmatprep.subr.mxu0 0.0
      %1506 = vmatpush1.msra.mxu0 0.0
      %1507 = vmatprep.subr.mxu0 0.0
      %1508 = vmatpush1.msra.mxu0 0.0
      %1509 = vmatprep.subr.mxu0 0.0
      %1510 = vmatpush1.msra.mxu0 0.0
      %1511 = vmatprep.subr.mxu0 0.0
      %1512 = vmatpush1.msra.mxu0 0.0
      %1513 = vmatprep.subr.mxu0 0.0
      %1514 = vmatpush1.msra.mxu0 0.0
      %1515 = vmatprep.subr.mxu0 0.0
      %1516 = vmatpush1.msra.mxu0 0.0
      %1517 = vmatprep.subr.mxu0 0.0
      %1518 = vmatpush1.msra.mxu0 0.0
      %1519 = vmatprep.subr.mxu0 0.0
      %1520 = vmatpush1.msra.mxu0 0.0
      %1521 = vmatprep.subr.mxu0 0.0
      %1522 = vmatpush1.msra.mxu0 0.0
      %1523 = vmatprep.subr.mxu0 0.0
      %1524 = vmatpush1.msra.mxu0 0.0
      %1525 = vmatprep.mubr.f32.mxu0 0.0
      %1526 = vmatmul.mubr.f32.gmra.mrb[0].mxu0 %v1456
      %v1527 = vpop.f32.mrb[0].mxu0
      %v1528 = vadd.f32 0.0, %v1527
      %v1529 = vpop.f32.mrb[0].mxu0
      %1530 = vmatprep.mubr.f32.mxu0 0.0
      %1531 = vmatmul.mubr.f32.gmra.mrb[0].mxu0 %v1459
      %v1532 = vpop.f32.mrb[0].mxu0
      %v1533 = vadd.f32 0.0, %v1532
      %v1534 = vpop.f32.mrb[0].mxu0
      %1535 = vdwg.mxu0
      %v1536 = vsel %vm1395, %v1528, 0.0
      %v1537 = vsel %vm1395, %v1533, 0.0
      %v1538 = vadd.f32 %v1536, %v1537
      %v1539 = vrot.slane %v1538, 4
      %v1540 = vadd.f32 %v1538, %v1539
      %v1541 = vrot.slane %v1540, 2
      %v1542 = vadd.f32 %v1540, %v1541
      %v1543 = vrot.slane %v1542, 1
      %v1544 = vadd.f32 %v1542, %v1543
      %v1545 = vmul.f32 %v1544, 0.0069444445
      %v1546 = vsel %vm1395, %v1545, -inf
      %1547 = vmax.xlane.f32.xlu0 %v1546
      %v1548 = vpop.xlane.xlu0 %1547
      %v1549 = vsub.f32 %v1545, %v1548
      %v1550 = vmul.f32 %v1549, 1.442695
      %v1551 = vpow.pop %v1550
      %v1552 = vsel %vm1395, %v1551, 0.0
      %1553 = vadd.xlane.f32.xlu0 %v1552
      %v1554 = vpop.xlane.xlu0 %1553
      %v1555 = vmul.f32 %v1554, 0.11111111
      %v1556 = vrcp.pop %v1555
      %v1557 = vmul.f32 %v1551, %v1556
      %v1558 = vmul.f32 %v1349, %v1557
      %v1559 = vmul.f32 %v1350, %v1557
      %v1560 = vld [vmem:[%s8] sm:$0xf]
      %v1561 = vld [vmem:[%s8 + $0x4] sm:$0xf]
      %v1562 = vld [vmem:[%s8 + $0x8] sm:$0xf]
      %v1563 = vld [vmem:[%s8 + $0xc] sm:$0xf]
      %v1564 = vld [vmem:[%s8 + $0x10] sm:$0xf]
      %v1565 = vld [vmem:[%s8 + $0x14] sm:$0xf]
      %v1566 = vld [vmem:[%s8 + $0x18] sm:$0xf]
      %v1567 = vld [vmem:[%s8 + $0x1c] sm:$0xf]
      %v1568 = vld [vmem:[%s8 + $0x20] sm:$0xf]
      %v1569 = vpack.c.bf16 %v1559, %v1558
      %v1570 = vld [vmem:[%s9] sm:$0x1]
      %v1572 = vlaneseq
      %v1573 = vshrl.u32 %v1572, 7
      %v1574 = vsub.s32 0, %v1573
      %v1575 = vrot.slane %v1570, %v1574
      %v1586 = vunpack.c.l.b16 %v1560
      %v1587 = vunpack.c.l.b16 %v1561
      %v1588 = vunpack.c.l.b16 %v1562
      %v1589 = vunpack.c.l.b16 %v1563
      %v1590 = vunpack.c.l.b16 %v1564
      %v1591 = vunpack.c.l.b16 %v1565
      %v1592 = vunpack.c.l.b16 %v1566
      %v1593 = vunpack.c.l.b16 %v1567
      %v1594 = vunpack.c.l.b16 %v1568
      %v1595 = vpack.c.b16 %v1587, %v1586
      %v1596 = vpack.c.b16 %v1589, %v1588
      %v1597 = vpack.c.b16 %v1591, %v1590
      %v1598 = vpack.c.b16 %v1593, %v1592
      %v1599 = vpack.c.b16 %v1594, %v1594
      %v1605 = vsel %vm1395, %v1569, 0
      %v1608 = vsel %vm1399, %v1599, 0
      %1610 = vmatprep.subr.bf16.mxu0 0
      %1611 = vmatpush1.bf16.msra.mxu0 %v1595
      %1612 = vmatprep.subr.bf16.mxu0 0
      %1613 = vmatpush1.bf16.msra.mxu0 %v1596
      %1614 = vmatprep.subr.bf16.mxu0 0
      %1615 = vmatpush1.bf16.msra.mxu0 %v1597
      %1616 = vmatprep.subr.bf16.mxu0 0
      %1617 = vmatpush1.bf16.msra.mxu0 %v1598
      %1618 = vmatprep.subr.bf16.mxu0 0
      %1619 = vmatpush1.bf16.msra.mxu0 %v1608
      %1620 = vmatprep.subr.bf16.mxu0 0
      %1621 = vmatpush1.bf16.msra.mxu0 0
      %1622 = vmatprep.subr.bf16.mxu0 0
      %1623 = vmatpush1.bf16.msra.mxu0 0
      %1624 = vmatprep.subr.bf16.mxu0 0
      %1625 = vmatpush1.bf16.msra.mxu0 0
      %1626 = vmatprep.subr.bf16.mxu0 0
      %1627 = vmatpush1.bf16.msra.mxu0 0
      %1628 = vmatprep.subr.bf16.mxu0 0
      %1629 = vmatpush1.bf16.msra.mxu0 0
      %1630 = vmatprep.subr.bf16.mxu0 0
      %1631 = vmatpush1.bf16.msra.mxu0 0
      %1632 = vmatprep.subr.bf16.mxu0 0
      %1633 = vmatpush1.bf16.msra.mxu0 0
      %1634 = vmatprep.subr.bf16.mxu0 0
      %1635 = vmatpush1.bf16.msra.mxu0 0
      %1636 = vmatprep.subr.bf16.mxu0 0
      %1637 = vmatpush1.bf16.msra.mxu0 0
      %1638 = vmatprep.subr.bf16.mxu0 0
      %1639 = vmatpush1.bf16.msra.mxu0 0
      %1640 = vmatprep.subr.bf16.mxu0 0
      %1641 = vmatpush1.bf16.msra.mxu0 0
      %1642 = vmatprep.mubr.bf16.mxu0 0
      %1643 = vmatmul.mubr.bf16.gmra.mrb[0].mxu0 %v1605
      %v1644 = vpop.f32.mrb[0].mxu0
      %v1645 = vadd.f32 %v1575, %v1644
      %v1646 = vpop.f32.mrb[0].mxu0
      %v1647 = vpop.f32.mrb[0].mxu0
      %v1648 = vadd.f32 %v1575, %v1647
      %v1649 = vpop.f32.mrb[0].mxu0
      %1650 = vdwg.mxu0
      %v1651 = vmax.f32 %v1645, 0.0
      %v1652 = vmax.f32 %v1648, 0.0
      %v1653 = vld [vmem:[%s10] sm:$0xf]
      %v1654 = vld [vmem:[%s10 + $0x4] sm:$0xf]
      %v1655 = vld [vmem:[%s10 + $0x8] sm:$0xf]
      %v1656 = vld [vmem:[%s10 + $0xc] sm:$0xf]
      %v1657 = vld [vmem:[%s10 + $0x10] sm:$0xf]
      %v1658 = vld [vmem:[%s10 + $0x14] sm:$0xf]
      %v1659 = vld [vmem:[%s10 + $0x18] sm:$0xf]
      %v1660 = vld [vmem:[%s10 + $0x1c] sm:$0xf]
      %v1661 = vld [vmem:[%s10 + $0x20] sm:$0xf]
      %v1662 = vpack.c.bf16 %v1652, %v1651
      %v1663 = vld [vmem:[%s11] sm:$0x1]
      %v1665 = vlaneseq
      %v1666 = vshrl.u32 %v1665, 7
      %v1667 = vsub.s32 0, %v1666
      %v1668 = vrot.slane %v1663, %v1667
      %v1679 = vunpack.c.l.b16 %v1653
      %v1680 = vunpack.c.l.b16 %v1654
      %v1681 = vunpack.c.l.b16 %v1655
      %v1682 = vunpack.c.l.b16 %v1656
      %v1683 = vunpack.c.l.b16 %v1657
      %v1684 = vunpack.c.l.b16 %v1658
      %v1685 = vunpack.c.l.b16 %v1659
      %v1686 = vunpack.c.l.b16 %v1660
      %v1687 = vunpack.c.l.b16 %v1661
      %v1688 = vpack.c.b16 %v1680, %v1679
      %v1689 = vpack.c.b16 %v1682, %v1681
      %v1690 = vpack.c.b16 %v1684, %v1683
      %v1691 = vpack.c.b16 %v1686, %v1685
      %v1692 = vpack.c.b16 %v1687, %v1687
      %v1698 = vsel %vm1395, %v1662, 0
      %v1701 = vsel %vm1399, %v1692, 0
      %1703 = vmatprep.subr.bf16.mxu0 0
      %1704 = vmatpush1.bf16.msra.mxu0 %v1688
      %1705 = vmatprep.subr.bf16.mxu0 0
      %1706 = vmatpush1.bf16.msra.mxu0 %v1689
      %1707 = vmatprep.subr.bf16.mxu0 0
      %1708 = vmatpush1.bf16.msra.mxu0 %v1690
      %1709 = vmatprep.subr.bf16.mxu0 0
      %1710 = vmatpush1.bf16.msra.mxu0 %v1691
      %1711 = vmatprep.subr.bf16.mxu0 0
      %1712 = vmatpush1.bf16.msra.mxu0 %v1701
      %1713 = vmatprep.subr.bf16.mxu0 0
      %1714 = vmatpush1.bf16.msra.mxu0 0
      %1715 = vmatprep.subr.bf16.mxu0 0
      %1716 = vmatpush1.bf16.msra.mxu0 0
      %1717 = vmatprep.subr.bf16.mxu0 0
      %1718 = vmatpush1.bf16.msra.mxu0 0
      %1719 = vmatprep.subr.bf16.mxu0 0
      %1720 = vmatpush1.bf16.msra.mxu0 0
      %1721 = vmatprep.subr.bf16.mxu0 0
      %1722 = vmatpush1.bf16.msra.mxu0 0
      %1723 = vmatprep.subr.bf16.mxu0 0
      %1724 = vmatpush1.bf16.msra.mxu0 0
      %1725 = vmatprep.subr.bf16.mxu0 0
      %1726 = vmatpush1.bf16.msra.mxu0 0
      %1727 = vmatprep.subr.bf16.mxu0 0
      %1728 = vmatpush1.bf16.msra.mxu0 0
      %1729 = vmatprep.subr.bf16.mxu0 0
      %1730 = vmatpush1.bf16.msra.mxu0 0
      %1731 = vmatprep.subr.bf16.mxu0 0
      %1732 = vmatpush1.bf16.msra.mxu0 0
      %1733 = vmatprep.subr.bf16.mxu0 0
      %1734 = vmatpush1.bf16.msra.mxu0 0
      %1735 = vmatprep.mubr.bf16.mxu0 0
      %1736 = vmatmul.mubr.bf16.gmra.mrb[0].mxu0 %v1698
      %v1737 = vpop.f32.mrb[0].mxu0
      %v1738 = vadd.f32 %v1668, %v1737
      %v1739 = vpop.f32.mrb[0].mxu0
      %v1740 = vpop.f32.mrb[0].mxu0
      %v1741 = vadd.f32 %v1668, %v1740
      %v1742 = vpop.f32.mrb[0].mxu0
      %1743 = vdwg.mxu0
      %v1744 = vadd.f32 %v1738, %v1349
      %v1745 = vadd.f32 %v1741, %v1350
      %v1746 = vmul.f32 %v1744, 0.15915494
      %v1747 = vmul.f32 %v1745, 0.15915494
      %v1748 = vadd.f32 %v1746, 0.5
      %v1749 = vadd.f32 %v1747, 0.5
      %v1750 = vfloor.f32 %v1748
      %v1751 = vfloor.f32 %v1749
      %v1752 = vmul.f32 %v1750, 6.2831855
      %v1753 = vmul.f32 %v1751, 6.2831855
      %v1754 = vsub.f32 %v1744, %v1752
      %v1755 = vsub.f32 %v1745, %v1753
      %v1756 = vand.u32 2147483647, %v1754
      %v1757 = vand.u32 2147483647, %v1755
      %vm1758 = vcmp.gt.f32.partialorder %v1756, 1.5707964
      %vm1759 = vcmp.gt.f32.partialorder %v1757, 1.5707964
      %vm1760 = vcmp.gt.f32.partialorder %v1754, 0.0
      %vm1761 = vcmp.gt.f32.partialorder %v1755, 0.0
      %v1762 = vsub.f32 3.1415927, %v1754
      %v1763 = vsub.f32 3.1415927, %v1755
      %v1764 = vsub.f32 -3.1415927, %v1754
      %v1765 = vsub.f32 -3.1415927, %v1755
      %v1766 = vsel %vm1760, %v1762, %v1764
      %v1767 = vsel %vm1761, %v1763, %v1765
      %v1768 = vsel %vm1758, %v1766, %v1754
      %v1769 = vsel %vm1759, %v1767, %v1755
      %v1770 = vmul.f32 %v1768, %v1768
      %v1771 = vmul.f32 %v1769, %v1769
      %v1772 = vmul.f32 %v1770, 2.7557319e-06
      %v1773 = vmul.f32 %v1771, 2.7557319e-06
      %v1774 = vadd.f32 %v1772, -0.0001984127
      %v1775 = vadd.f32 %v1773, -0.0001984127
      %v1776 = vmul.f32 %v1770, %v1774
      %v1777 = vmul.f32 %v1771, %v1775
      %v1778 = vadd.f32 %v1776, 0.008333334
      %v1779 = vadd.f32 %v1777, 0.008333334
      %v1780 = vmul.f32 %v1770, %v1778
      %v1781 = vmul.f32 %v1771, %v1779
      %v1782 = vadd.f32 %v1780, -0.16666667
      %v1783 = vadd.f32 %v1781, -0.16666667
      %v1784 = vmul.f32 %v1770, %v1782
      %v1785 = vmul.f32 %v1771, %v1783
      %v1786 = vadd.f32 %v1784, 1.0
      %v1787 = vadd.f32 %v1785, 1.0
      %v1788 = vmul.f32 %v1768, %v1786
      %v1789 = vmul.f32 %v1769, %v1787
      %v1790 = vmul.f32 %v1770, 2.755732e-07
      %v1791 = vmul.f32 %v1771, 2.755732e-07
      %v1792 = vsub.f32 2.4801588e-05, %v1790
      %v1793 = vsub.f32 2.4801588e-05, %v1791
      %v1794 = vmul.f32 %v1770, %v1792
      %v1795 = vmul.f32 %v1771, %v1793
      %v1796 = vadd.f32 %v1794, -0.0013888889
      %v1797 = vadd.f32 %v1795, -0.0013888889
      %v1798 = vmul.f32 %v1770, %v1796
      %v1799 = vmul.f32 %v1771, %v1797
      %v1800 = vadd.f32 %v1798, 0.041666668
      %v1801 = vadd.f32 %v1799, 0.041666668
      %v1802 = vmul.f32 %v1770, %v1800
      %v1803 = vmul.f32 %v1771, %v1801
      %v1804 = vadd.f32 %v1802, -0.5
      %v1805 = vadd.f32 %v1803, -0.5
      %v1806 = vmul.f32 %v1770, %v1804
      %v1807 = vmul.f32 %v1771, %v1805
      %v1808 = vadd.f32 %v1806, 1.0
      %v1809 = vadd.f32 %v1807, 1.0
      %v1810 = vsub.f32 0.0, %v1808
      %v1811 = vsub.f32 0.0, %v1809
      %v1812 = vsel %vm1758, %v1810, %v1808
      %v1813 = vsel %vm1759, %v1811, %v1809
      %v1814 = vmul.f32 %v1438, %v1812
      %v1815 = vmul.f32 %v1441, %v1813
      %v1816 = vmul.f32 %v1438, %v1788
      %v1817 = vmul.f32 %v1441, %v1789
      %v1818 = vld [vmem:[%s13] sm:$0xf]
      %v1819 = vld [vmem:[%s13 + $0x4] sm:$0xf]
      %v1820 = vld [vmem:[%s13 + $0x8] sm:$0xf]
      %v1821 = vld [vmem:[%s13 + $0xc] sm:$0xf]
      %v1822 = vld [vmem:[%s13 + $0x10] sm:$0xf]
      %v1823 = vld [vmem:[%s13 + $0x14] sm:$0xf]
      %v1824 = vld [vmem:[%s13 + $0x18] sm:$0xf]
      %v1825 = vld [vmem:[%s13 + $0x1c] sm:$0xf]
      %v1826 = vld [vmem:[%s13 + $0x20] sm:$0xf]
      %v1827 = vpack.c.bf16 %v1815, %v1814
      %v1837 = vunpack.c.l.b16 %v1818
      %v1838 = vunpack.c.l.b16 %v1819
      %v1839 = vunpack.c.l.b16 %v1820
      %v1840 = vunpack.c.l.b16 %v1821
      %v1841 = vunpack.c.l.b16 %v1822
      %v1842 = vunpack.c.l.b16 %v1823
      %v1843 = vunpack.c.l.b16 %v1824
      %v1844 = vunpack.c.l.b16 %v1825
      %v1845 = vunpack.c.l.b16 %v1826
      %v1846 = vpack.c.b16 %v1838, %v1837
      %v1847 = vpack.c.b16 %v1840, %v1839
      %v1848 = vpack.c.b16 %v1842, %v1841
      %v1849 = vpack.c.b16 %v1844, %v1843
      %v1850 = vpack.c.b16 %v1845, %v1845
      %v1856 = vsel %vm1395, %v1827, 0
      %v1859 = vsel %vm1399, %v1850, 0
      %1861 = vmatprep.subr.bf16.mxu0 0
      %1862 = vmatpush1.bf16.msra.mxu0 %v1846
      %1863 = vmatprep.subr.bf16.mxu0 0
      %1864 = vmatpush1.bf16.msra.mxu0 %v1847
      %1865 = vmatprep.subr.bf16.mxu0 0
      %1866 = vmatpush1.bf16.msra.mxu0 %v1848
      %1867 = vmatprep.subr.bf16.mxu0 0
      %1868 = vmatpush1.bf16.msra.mxu0 %v1849
      %1869 = vmatprep.subr.bf16.mxu0 0
      %1870 = vmatpush1.bf16.msra.mxu0 %v1859
      %1871 = vmatprep.subr.bf16.mxu0 0
      %1872 = vmatpush1.bf16.msra.mxu0 0
      %1873 = vmatprep.subr.bf16.mxu0 0
      %1874 = vmatpush1.bf16.msra.mxu0 0
      %1875 = vmatprep.subr.bf16.mxu0 0
      %1876 = vmatpush1.bf16.msra.mxu0 0
      %1877 = vmatprep.subr.bf16.mxu0 0
      %1878 = vmatpush1.bf16.msra.mxu0 0
      %1879 = vmatprep.subr.bf16.mxu0 0
      %1880 = vmatpush1.bf16.msra.mxu0 0
      %1881 = vmatprep.subr.bf16.mxu0 0
      %1882 = vmatpush1.bf16.msra.mxu0 0
      %1883 = vmatprep.subr.bf16.mxu0 0
      %1884 = vmatpush1.bf16.msra.mxu0 0
      %1885 = vmatprep.subr.bf16.mxu0 0
      %1886 = vmatpush1.bf16.msra.mxu0 0
      %1887 = vmatprep.subr.bf16.mxu0 0
      %1888 = vmatpush1.bf16.msra.mxu0 0
      %1889 = vmatprep.subr.bf16.mxu0 0
      %1890 = vmatpush1.bf16.msra.mxu0 0
      %1891 = vmatprep.subr.bf16.mxu0 0
      %1892 = vmatpush1.bf16.msra.mxu0 0
      %1893 = vmatprep.mubr.bf16.mxu0 0
      %1894 = vmatmul.mubr.bf16.gmra.mrb[0].mxu0 %v1856
      %v1895 = vpop.f32.mrb[0].mxu0
      %v1896 = vadd.f32 0.0, %v1895
      %v1897 = vpop.f32.mrb[0].mxu0
      %v1898 = vpop.f32.mrb[0].mxu0
      %v1899 = vadd.f32 0.0, %v1898
      %v1900 = vpop.f32.mrb[0].mxu0
      %1901 = vdwg.mxu0
      %v1902 = vld [vmem:[%s14] sm:$0xf]
      %v1903 = vld [vmem:[%s14 + $0x4] sm:$0xf]
      %v1904 = vld [vmem:[%s14 + $0x8] sm:$0xf]
      %v1905 = vld [vmem:[%s14 + $0xc] sm:$0xf]
      %v1906 = vld [vmem:[%s14 + $0x10] sm:$0xf]
      %v1907 = vld [vmem:[%s14 + $0x14] sm:$0xf]
      %v1908 = vld [vmem:[%s14 + $0x18] sm:$0xf]
      %v1909 = vld [vmem:[%s14 + $0x1c] sm:$0xf]
      %v1910 = vld [vmem:[%s14 + $0x20] sm:$0xf]
      %v1911 = vpack.c.bf16 %v1817, %v1816
      %v1921 = vunpack.c.l.b16 %v1902
      %v1922 = vunpack.c.l.b16 %v1903
      %v1923 = vunpack.c.l.b16 %v1904
      %v1924 = vunpack.c.l.b16 %v1905
      %v1925 = vunpack.c.l.b16 %v1906
      %v1926 = vunpack.c.l.b16 %v1907
      %v1927 = vunpack.c.l.b16 %v1908
      %v1928 = vunpack.c.l.b16 %v1909
      %v1929 = vunpack.c.l.b16 %v1910
      %v1930 = vpack.c.b16 %v1922, %v1921
      %v1931 = vpack.c.b16 %v1924, %v1923
      %v1932 = vpack.c.b16 %v1926, %v1925
      %v1933 = vpack.c.b16 %v1928, %v1927
      %v1934 = vpack.c.b16 %v1929, %v1929
      %v1940 = vsel %vm1395, %v1911, 0
      %v1943 = vsel %vm1399, %v1934, 0
      %1945 = vmatprep.subr.bf16.mxu0 0
      %1946 = vmatpush1.bf16.msra.mxu0 %v1930
      %1947 = vmatprep.subr.bf16.mxu0 0
      %1948 = vmatpush1.bf16.msra.mxu0 %v1931
      %1949 = vmatprep.subr.bf16.mxu0 0
      %1950 = vmatpush1.bf16.msra.mxu0 %v1932
      %1951 = vmatprep.subr.bf16.mxu0 0
      %1952 = vmatpush1.bf16.msra.mxu0 %v1933
      %1953 = vmatprep.subr.bf16.mxu0 0
      %1954 = vmatpush1.bf16.msra.mxu0 %v1943
      %1955 = vmatprep.subr.bf16.mxu0 0
      %1956 = vmatpush1.bf16.msra.mxu0 0
      %1957 = vmatprep.subr.bf16.mxu0 0
      %1958 = vmatpush1.bf16.msra.mxu0 0
      %1959 = vmatprep.subr.bf16.mxu0 0
      %1960 = vmatpush1.bf16.msra.mxu0 0
      %1961 = vmatprep.subr.bf16.mxu0 0
      %1962 = vmatpush1.bf16.msra.mxu0 0
      %1963 = vmatprep.subr.bf16.mxu0 0
      %1964 = vmatpush1.bf16.msra.mxu0 0
      %1965 = vmatprep.subr.bf16.mxu0 0
      %1966 = vmatpush1.bf16.msra.mxu0 0
      %1967 = vmatprep.subr.bf16.mxu0 0
      %1968 = vmatpush1.bf16.msra.mxu0 0
      %1969 = vmatprep.subr.bf16.mxu0 0
      %1970 = vmatpush1.bf16.msra.mxu0 0
      %1971 = vmatprep.subr.bf16.mxu0 0
      %1972 = vmatpush1.bf16.msra.mxu0 0
      %1973 = vmatprep.subr.bf16.mxu0 0
      %1974 = vmatpush1.bf16.msra.mxu0 0
      %1975 = vmatprep.subr.bf16.mxu0 0
      %1976 = vmatpush1.bf16.msra.mxu0 0
      %1977 = vmatprep.mubr.bf16.mxu0 0
      %1978 = vmatmul.mubr.bf16.gmra.mrb[0].mxu0 %v1940
      %v1979 = vpop.f32.mrb[0].mxu0
      %v1980 = vadd.f32 0.0, %v1979
      %v1981 = vpop.f32.mrb[0].mxu0
      %v1982 = vpop.f32.mrb[0].mxu0
      %v1983 = vadd.f32 0.0, %v1982
      %v1984 = vpop.f32.mrb[0].mxu0
      %1985 = vdwg.mxu0
      %v1986 = vsub.f32 %v1896, %v1980
      %v1987 = vsub.f32 %v1899, %v1983
      %1988 = vmatprep.subr.bf16.mxu0 0
      %1989 = vmatpush1.bf16.msra.mxu0 %v1846
      %1990 = vmatprep.subr.bf16.mxu0 0
      %1991 = vmatpush1.bf16.msra.mxu0 %v1847
      %1992 = vmatprep.subr.bf16.mxu0 0
      %1993 = vmatpush1.bf16.msra.mxu0 %v1848
      %1994 = vmatprep.subr.bf16.mxu0 0
      %1995 = vmatpush1.bf16.msra.mxu0 %v1849
      %1996 = vmatprep.subr.bf16.mxu0 0
      %1997 = vmatpush1.bf16.msra.mxu0 %v1859
      %1998 = vmatprep.subr.bf16.mxu0 0
      %1999 = vmatpush1.bf16.msra.mxu0 0
      %2000 = vmatprep.subr.bf16.mxu0 0
      %2001 = vmatpush1.bf16.msra.mxu0 0
      %2002 = vmatprep.subr.bf16.mxu0 0
      %2003 = vmatpush1.bf16.msra.mxu0 0
      %2004 = vmatprep.subr.bf16.mxu0 0
      %2005 = vmatpush1.bf16.msra.mxu0 0
      %2006 = vmatprep.subr.bf16.mxu0 0
      %2007 = vmatpush1.bf16.msra.mxu0 0
      %2008 = vmatprep.subr.bf16.mxu0 0
      %2009 = vmatpush1.bf16.msra.mxu0 0
      %2010 = vmatprep.subr.bf16.mxu0 0
      %2011 = vmatpush1.bf16.msra.mxu0 0
      %2012 = vmatprep.subr.bf16.mxu0 0
      %2013 = vmatpush1.bf16.msra.mxu0 0
      %2014 = vmatprep.subr.bf16.mxu0 0
      %2015 = vmatpush1.bf16.msra.mxu0 0
      %2016 = vmatprep.subr.bf16.mxu0 0
      %2017 = vmatpush1.bf16.msra.mxu0 0
      %2018 = vmatprep.subr.bf16.mxu0 0
      %2019 = vmatpush1.bf16.msra.mxu0 0
      %2020 = vmatprep.mubr.bf16.mxu0 0
      %2021 = vmatmul.mubr.bf16.gmra.mrb[0].mxu0 %v1940
      %v2022 = vpop.f32.mrb[0].mxu0
      %v2023 = vadd.f32 0.0, %v2022
      %v2024 = vpop.f32.mrb[0].mxu0
      %v2025 = vpop.f32.mrb[0].mxu0
      %v2026 = vadd.f32 0.0, %v2025
      %v2027 = vpop.f32.mrb[0].mxu0
      %2028 = vdwg.mxu0
      %2029 = vmatprep.subr.bf16.mxu0 0
      %2030 = vmatpush1.bf16.msra.mxu0 %v1930
      %2031 = vmatprep.subr.bf16.mxu0 0
      %2032 = vmatpush1.bf16.msra.mxu0 %v1931
      %2033 = vmatprep.subr.bf16.mxu0 0
      %2034 = vmatpush1.bf16.msra.mxu0 %v1932
      %2035 = vmatprep.subr.bf16.mxu0 0
      %2036 = vmatpush1.bf16.msra.mxu0 %v1933
      %2037 = vmatprep.subr.bf16.mxu0 0
      %2038 = vmatpush1.bf16.msra.mxu0 %v1943
      %2039 = vmatprep.subr.bf16.mxu0 0
      %2040 = vmatpush1.bf16.msra.mxu0 0
      %2041 = vmatprep.subr.bf16.mxu0 0
      %2042 = vmatpush1.bf16.msra.mxu0 0
      %2043 = vmatprep.subr.bf16.mxu0 0
      %2044 = vmatpush1.bf16.msra.mxu0 0
      %2045 = vmatprep.subr.bf16.mxu0 0
      %2046 = vmatpush1.bf16.msra.mxu0 0
      %2047 = vmatprep.subr.bf16.mxu0 0
      %2048 = vmatpush1.bf16.msra.mxu0 0
      %2049 = vmatprep.subr.bf16.mxu0 0
      %2050 = vmatpush1.bf16.msra.mxu0 0
      %2051 = vmatprep.subr.bf16.mxu0 0
      %2052 = vmatpush1.bf16.msra.mxu0 0
      %2053 = vmatprep.subr.bf16.mxu0 0
      %2054 = vmatpush1.bf16.msra.mxu0 0
      %2055 = vmatprep.subr.bf16.mxu0 0
      %2056 = vmatpush1.bf16.msra.mxu0 0
      %2057 = vmatprep.subr.bf16.mxu0 0
      %2058 = vmatpush1.bf16.msra.mxu0 0
      %2059 = vmatprep.subr.bf16.mxu0 0
      %2060 = vmatpush1.bf16.msra.mxu0 0
      %2061 = vmatprep.mubr.bf16.mxu0 0
      %2062 = vmatmul.mubr.bf16.gmra.mrb[0].mxu0 %v1856
      %v2063 = vpop.f32.mrb[0].mxu0
      %v2064 = vadd.f32 %v2023, %v2063
      %v2065 = vpop.f32.mrb[0].mxu0
      %v2066 = vpop.f32.mrb[0].mxu0
      %v2067 = vadd.f32 %v2026, %v2066
      %v2068 = vpop.f32.mrb[0].mxu0
      %2069 = vdwg.mxu0
      %v2070 = vpack.c.bf16 %v1987, %v1986
      %2071 = vmatprep.subr.bf16.mxu0 0
      %2072 = vmatpush1.bf16.msra.mxu0 %v2070
      %2073 = vmatprep.subr.bf16.mxu0 0
      %2074 = vmatpush1.bf16.msra.mxu0 0
      %2075 = vmatprep.subr.bf16.mxu0 0
      %2076 = vmatpush1.bf16.msra.mxu0 0
      %2077 = vmatprep.subr.bf16.mxu0 0
      %2078 = vmatpush1.bf16.msra.mxu0 0
      %2079 = vmatprep.subr.bf16.mxu0 0
      %2080 = vmatpush1.bf16.msra.mxu0 0
      %2081 = vmatprep.subr.bf16.mxu0 0
      %2082 = vmatpush1.bf16.msra.mxu0 0
      %2083 = vmatprep.subr.bf16.mxu0 0
      %2084 = vmatpush1.bf16.msra.mxu0 0
      %2085 = vmatprep.subr.bf16.mxu0 0
      %2086 = vmatpush1.bf16.msra.mxu0 0
      %2087 = vmatprep.subr.bf16.mxu0 0
      %2088 = vmatpush1.bf16.msra.mxu0 0
      %2089 = vmatprep.subr.bf16.mxu0 0
      %2090 = vmatpush1.bf16.msra.mxu0 0
      %2091 = vmatprep.subr.bf16.mxu0 0
      %2092 = vmatpush1.bf16.msra.mxu0 0
      %2093 = vmatprep.subr.bf16.mxu0 0
      %2094 = vmatpush1.bf16.msra.mxu0 0
      %2095 = vmatprep.subr.bf16.mxu0 0
      %2096 = vmatpush1.bf16.msra.mxu0 0
      %2097 = vmatprep.subr.bf16.mxu0 0
      %2098 = vmatpush1.bf16.msra.mxu0 0
      %2099 = vmatprep.subr.bf16.mxu0 0
      %2100 = vmatpush1.bf16.msra.mxu0 0
      %2101 = vmatprep.subr.bf16.mxu0 0
      %2102 = vmatpush1.bf16.msra.mxu0 0
      %2103 = vmatprep.mubr.bf16.mxu0 0
      %2104 = vmatmul.mubr.bf16.gmra.mrb[0].mxu0 %v1148
      %v2105 = vpop.f32.mrb[0].mxu0
      %v2106 = vadd.f32 0.0, %v2105
      %v2107 = vpop.f32.mrb[0].mxu0
      %v2108 = vpop.f32.mrb[0].mxu0
      %v2109 = vadd.f32 0.0, %v2108
      %v2110 = vpop.f32.mrb[0].mxu0
      %2111 = vdwg.mxu0
      %v2112 = vpack.c.bf16 %v2067, %v2064
      %2113 = vmatprep.subr.bf16.mxu0 0
      %2114 = vmatpush1.bf16.msra.mxu0 %v2112
      %2115 = vmatprep.subr.bf16.mxu0 0
      %2116 = vmatpush1.bf16.msra.mxu0 0
      %2117 = vmatprep.subr.bf16.mxu0 0
      %2118 = vmatpush1.bf16.msra.mxu0 0
      %2119 = vmatprep.subr.bf16.mxu0 0
      %2120 = vmatpush1.bf16.msra.mxu0 0
      %2121 = vmatprep.subr.bf16.mxu0 0
      %2122 = vmatpush1.bf16.msra.mxu0 0
      %2123 = vmatprep.subr.bf16.mxu0 0
      %2124 = vmatpush1.bf16.msra.mxu0 0
      %2125 = vmatprep.subr.bf16.mxu0 0
      %2126 = vmatpush1.bf16.msra.mxu0 0
      %2127 = vmatprep.subr.bf16.mxu0 0
      %2128 = vmatpush1.bf16.msra.mxu0 0
      %2129 = vmatprep.subr.bf16.mxu0 0
      %2130 = vmatpush1.bf16.msra.mxu0 0
      %2131 = vmatprep.subr.bf16.mxu0 0
      %2132 = vmatpush1.bf16.msra.mxu0 0
      %2133 = vmatprep.subr.bf16.mxu0 0
      %2134 = vmatpush1.bf16.msra.mxu0 0
      %2135 = vmatprep.subr.bf16.mxu0 0
      %2136 = vmatpush1.bf16.msra.mxu0 0
      %2137 = vmatprep.subr.bf16.mxu0 0
      %2138 = vmatpush1.bf16.msra.mxu0 0
      %2139 = vmatprep.subr.bf16.mxu0 0
      %2140 = vmatpush1.bf16.msra.mxu0 0
      %2141 = vmatprep.subr.bf16.mxu0 0
      %2142 = vmatpush1.bf16.msra.mxu0 0
      %2143 = vmatprep.subr.bf16.mxu0 0
      %2144 = vmatpush1.bf16.msra.mxu0 0
      %2145 = vmatprep.mubr.bf16.mxu0 0
      %2146 = vmatmul.mubr.bf16.gmra.mrb[0].mxu0 %v1099
      %v2147 = vpop.f32.mrb[0].mxu0
      %v2148 = vadd.f32 0.0, %v2147
      %v2149 = vpop.f32.mrb[0].mxu0
      %v2150 = vpop.f32.mrb[0].mxu0
      %v2151 = vadd.f32 0.0, %v2150
      %v2152 = vpop.f32.mrb[0].mxu0
      %2153 = vdwg.mxu0
      %v2154 = vsub.f32 %v2106, %v2148
      %v2155 = vsub.f32 %v2109, %v2151
      %v2156 = vld [vmem:[%s15] sm:$0xff]
      %v2157 = vld [vmem:[%s15 + $0x8] sm:$0xff]
      %v2158 = vld [vmem:[%s15 + $0x10] sm:$0xff]
      %v2159 = vld [vmem:[%s15 + $0x18] sm:$0xff]
      %v2160 = vld [vmem:[%s15 + $0x20] sm:$0xff]
      %v2161 = vld [vmem:[%s15 + $0x28] sm:$0xff]
      %v2162 = vld [vmem:[%s15 + $0x30] sm:$0xff]
      %v2163 = vld [vmem:[%s15 + $0x38] sm:$0xff]
      %v2164 = vld [vmem:[%s15 + $0x40] sm:$0xff]
      %v2165 = vld [vmem:[%s15 + $0x48] sm:$0xff]
      %v2166 = vld [vmem:[%s15 + $0x50] sm:$0xff]
      %v2167 = vld [vmem:[%s15 + $0x58] sm:$0xff]
      %v2168 = vld [vmem:[%s15 + $0x60] sm:$0xff]
      %v2169 = vld [vmem:[%s15 + $0x68] sm:$0xff]
      %v2170 = vld [vmem:[%s15 + $0x70] sm:$0xff]
      %v2171 = vld [vmem:[%s15 + $0x78] sm:$0xff]
      %v2172 = vld [vmem:[%s15 + $0x80] sm:$0xff]
      %v2173 = vld [vmem:[%s15 + $0x88] sm:$0xff]
      %v2174 = vld [vmem:[%s15 + $0x90] sm:$0xff]
      %v2175 = vld [vmem:[%s15 + $0x98] sm:$0xff]
      %v2176 = vld [vmem:[%s15 + $0xa0] sm:$0xff]
      %v2177 = vld [vmem:[%s15 + $0xa8] sm:$0xff]
      %v2178 = vld [vmem:[%s15 + $0xb0] sm:$0xff]
      %v2179 = vld [vmem:[%s15 + $0xb8] sm:$0xff]
      %v2180 = vld [vmem:[%s15 + $0xc0] sm:$0xff]
      %v2181 = vld [vmem:[%s15 + $0xc8] sm:$0xff]
      %v2182 = vld [vmem:[%s15 + $0xd0] sm:$0xff]
      %v2183 = vld [vmem:[%s15 + $0xd8] sm:$0xff]
      %v2184 = vld [vmem:[%s15 + $0xe0] sm:$0xff]
      %v2185 = vld [vmem:[%s15 + $0xe8] sm:$0xff]
      %v2186 = vld [vmem:[%s15 + $0xf0] sm:$0xff]
      %v2187 = vld [vmem:[%s15 + $0xf8] sm:$0xff]
      %v2188 = vpack.c.bf16 %v2155, %v2154
      %v2221 = vunpack.c.l.b16 %v2156
      %v2222 = vunpack.c.h.b16 %v2156
      %v2223 = vunpack.c.l.b16 %v2157
      %v2224 = vunpack.c.h.b16 %v2157
      %v2225 = vunpack.c.l.b16 %v2158
      %v2226 = vunpack.c.h.b16 %v2158
      %v2227 = vunpack.c.l.b16 %v2159
      %v2228 = vunpack.c.h.b16 %v2159
      %v2229 = vunpack.c.l.b16 %v2160
      %v2230 = vunpack.c.h.b16 %v2160
      %v2231 = vunpack.c.l.b16 %v2161
      %v2232 = vunpack.c.h.b16 %v2161
      %v2233 = vunpack.c.l.b16 %v2162
      %v2234 = vunpack.c.h.b16 %v2162
      %v2235 = vunpack.c.l.b16 %v2163
      %v2236 = vunpack.c.h.b16 %v2163
      %v2237 = vunpack.c.l.b16 %v2164
      %v2238 = vunpack.c.h.b16 %v2164
      %v2239 = vunpack.c.l.b16 %v2165
      %v2240 = vunpack.c.h.b16 %v2165
      %v2241 = vunpack.c.l.b16 %v2166
      %v2242 = vunpack.c.h.b16 %v2166
      %v2243 = vunpack.c.l.b16 %v2167
      %v2244 = vunpack.c.h.b16 %v2167
      %v2245 = vunpack.c.l.b16 %v2168
      %v2246 = vunpack.c.h.b16 %v2168
      %v2247 = vunpack.c.l.b16 %v2169
      %v2248 = vunpack.c.h.b16 %v2169
      %v2249 = vunpack.c.l.b16 %v2170
      %v2250 = vunpack.c.h.b16 %v2170
      %v2251 = vunpack.c.l.b16 %v2171
      %v2252 = vunpack.c.h.b16 %v2171
      %v2253 = vunpack.c.l.b16 %v2172
      %v2254 = vunpack.c.h.b16 %v2172
      %v2255 = vunpack.c.l.b16 %v2173
      %v2256 = vunpack.c.h.b16 %v2173
      %v2257 = vunpack.c.l.b16 %v2174
      %v2258 = vunpack.c.h.b16 %v2174
      %v2259 = vunpack.c.l.b16 %v2175
      %v2260 = vunpack.c.h.b16 %v2175
      %v2261 = vunpack.c.l.b16 %v2176
      %v2262 = vunpack.c.h.b16 %v2176
      %v2263 = vunpack.c.l.b16 %v2177
      %v2264 = vunpack.c.h.b16 %v2177
      %v2265 = vunpack.c.l.b16 %v2178
      %v2266 = vunpack.c.h.b16 %v2178
      %v2267 = vunpack.c.l.b16 %v2179
      %v2268 = vunpack.c.h.b16 %v2179
      %v2269 = vunpack.c.l.b16 %v2180
      %v2270 = vunpack.c.h.b16 %v2180
      %v2271 = vunpack.c.l.b16 %v2181
      %v2272 = vunpack.c.h.b16 %v2181
      %v2273 = vunpack.c.l.b16 %v2182
      %v2274 = vunpack.c.h.b16 %v2182
      %v2275 = vunpack.c.l.b16 %v2183
      %v2276 = vunpack.c.h.b16 %v2183
      %v2277 = vunpack.c.l.b16 %v2184
      %v2278 = vunpack.c.h.b16 %v2184
      %v2279 = vunpack.c.l.b16 %v2185
      %v2280 = vunpack.c.h.b16 %v2185
      %v2281 = vunpack.c.l.b16 %v2186
      %v2282 = vunpack.c.h.b16 %v2186
      %v2283 = vunpack.c.l.b16 %v2187
      %v2284 = vunpack.c.h.b16 %v2187
      %v2285 = vpack.c.b16 %v2225, %v2221
      %v2286 = vpack.c.b16 %v2226, %v2222
      %v2287 = vpack.c.b16 %v2227, %v2223
      %v2288 = vpack.c.b16 %v2228, %v2224
      %v2289 = vpack.c.b16 %v2233, %v2229
      %v2290 = vpack.c.b16 %v2234, %v2230
      %v2291 = vpack.c.b16 %v2235, %v2231
      %v2292 = vpack.c.b16 %v2236, %v2232
      %v2293 = vpack.c.b16 %v2241, %v2237
      %v2294 = vpack.c.b16 %v2242, %v2238
      %v2295 = vpack.c.b16 %v2243, %v2239
      %v2296 = vpack.c.b16 %v2244, %v2240
      %v2297 = vpack.c.b16 %v2249, %v2245
      %v2298 = vpack.c.b16 %v2250, %v2246
      %v2299 = vpack.c.b16 %v2251, %v2247
      %v2300 = vpack.c.b16 %v2252, %v2248
      %v2301 = vpack.c.b16 %v2257, %v2253
      %v2302 = vpack.c.b16 %v2258, %v2254
      %v2303 = vpack.c.b16 %v2259, %v2255
      %v2304 = vpack.c.b16 %v2260, %v2256
      %v2305 = vpack.c.b16 %v2265, %v2261
      %v2306 = vpack.c.b16 %v2266, %v2262
      %v2307 = vpack.c.b16 %v2267, %v2263
      %v2308 = vpack.c.b16 %v2268, %v2264
      %v2309 = vpack.c.b16 %v2273, %v2269
      %v2310 = vpack.c.b16 %v2274, %v2270
      %v2311 = vpack.c.b16 %v2275, %v2271
      %v2312 = vpack.c.b16 %v2276, %v2272
      %v2313 = vpack.c.b16 %v2281, %v2277
      %v2314 = vpack.c.b16 %v2282, %v2278
      %v2315 = vpack.c.b16 %v2283, %v2279
      %v2316 = vpack.c.b16 %v2284, %v2280
      %2349 = vmatprep.subr.bf16.mxu0 %v2286
      %2350 = vmatpush1.bf16.msra.mxu0 %v2285
      %2351 = vmatprep.subr.bf16.mxu0 %v2290
      %2352 = vmatpush1.bf16.msra.mxu0 %v2289
      %2353 = vmatprep.subr.bf16.mxu0 %v2294
      %2354 = vmatpush1.bf16.msra.mxu0 %v2293
      %2355 = vmatprep.subr.bf16.mxu0 %v2298
      %2356 = vmatpush1.bf16.msra.mxu0 %v2297
      %2357 = vmatprep.subr.bf16.mxu0 %v2302
      %2358 = vmatpush1.bf16.msra.mxu0 %v2301
      %2359 = vmatprep.subr.bf16.mxu0 %v2306
      %2360 = vmatpush1.bf16.msra.mxu0 %v2305
      %2361 = vmatprep.subr.bf16.mxu0 %v2310
      %2362 = vmatpush1.bf16.msra.mxu0 %v2309
      %2363 = vmatprep.subr.bf16.mxu0 %v2314
      %2364 = vmatpush1.bf16.msra.mxu0 %v2313
      %2365 = vmatprep.subr.bf16.mxu0 0
      %2366 = vmatpush1.bf16.msra.mxu0 0
      %2367 = vmatprep.subr.bf16.mxu0 0
      %2368 = vmatpush1.bf16.msra.mxu0 0
      %2369 = vmatprep.subr.bf16.mxu0 0
      %2370 = vmatpush1.bf16.msra.mxu0 0
      %2371 = vmatprep.subr.bf16.mxu0 0
      %2372 = vmatpush1.bf16.msra.mxu0 0
      %2373 = vmatprep.subr.bf16.mxu0 0
      %2374 = vmatpush1.bf16.msra.mxu0 0
      %2375 = vmatprep.subr.bf16.mxu0 0
      %2376 = vmatpush1.bf16.msra.mxu0 0
      %2377 = vmatprep.subr.bf16.mxu0 0
      %2378 = vmatpush1.bf16.msra.mxu0 0
      %2379 = vmatprep.subr.bf16.mxu0 0
      %2380 = vmatpush1.bf16.msra.mxu0 0
      %2381 = vmatprep.mubr.bf16.mxu0 0
      %2382 = vmatmul.mubr.bf16.gmra.mrb[0].mxu0 %v2188
      %v2383 = vpop.f32.mrb[0].mxu0
      %v2384 = vadd.f32 0.0, %v2383
      %v2385 = vpop.f32.mrb[0].mxu0
      %v2386 = vadd.f32 0.0, %v2385
      %v2387 = vpop.f32.mrb[0].mxu0
      %v2388 = vadd.f32 0.0, %v2387
      %v2389 = vpop.f32.mrb[0].mxu0
      %v2390 = vadd.f32 0.0, %v2389
      %2391 = vdwg.mxu0
      %2392 = vmatprep.subr.bf16.mxu0 %v2288
      %2393 = vmatpush1.bf16.msra.mxu0 %v2287
      %2394 = vmatprep.subr.bf16.mxu0 %v2292
      %2395 = vmatpush1.bf16.msra.mxu0 %v2291
      %2396 = vmatprep.subr.bf16.mxu0 %v2296
      %2397 = vmatpush1.bf16.msra.mxu0 %v2295
      %2398 = vmatprep.subr.bf16.mxu0 %v2300
      %2399 = vmatpush1.bf16.msra.mxu0 %v2299
      %2400 = vmatprep.subr.bf16.mxu0 %v2304
      %2401 = vmatpush1.bf16.msra.mxu0 %v2303
      %2402 = vmatprep.subr.bf16.mxu0 %v2308
      %2403 = vmatpush1.bf16.msra.mxu0 %v2307
      %2404 = vmatprep.subr.bf16.mxu0 %v2312
      %2405 = vmatpush1.bf16.msra.mxu0 %v2311
      %2406 = vmatprep.subr.bf16.mxu0 %v2316
      %2407 = vmatpush1.bf16.msra.mxu0 %v2315
      %2408 = vmatprep.subr.bf16.mxu0 0
      %2409 = vmatpush1.bf16.msra.mxu0 0
      %2410 = vmatprep.subr.bf16.mxu0 0
      %2411 = vmatpush1.bf16.msra.mxu0 0
      %2412 = vmatprep.subr.bf16.mxu0 0
      %2413 = vmatpush1.bf16.msra.mxu0 0
      %2414 = vmatprep.subr.bf16.mxu0 0
      %2415 = vmatpush1.bf16.msra.mxu0 0
      %2416 = vmatprep.subr.bf16.mxu0 0
      %2417 = vmatpush1.bf16.msra.mxu0 0
      %2418 = vmatprep.subr.bf16.mxu0 0
      %2419 = vmatpush1.bf16.msra.mxu0 0
      %2420 = vmatprep.subr.bf16.mxu0 0
      %2421 = vmatpush1.bf16.msra.mxu0 0
      %2422 = vmatprep.subr.bf16.mxu0 0
      %2423 = vmatpush1.bf16.msra.mxu0 0
      %2424 = vmatprep.mubr.bf16.mxu0 0
      %2425 = vmatmul.mubr.bf16.gmra.mrb[0].mxu0 %v2188
      %v2426 = vpop.f32.mrb[0].mxu0
      %v2427 = vadd.f32 0.0, %v2426
      %v2428 = vpop.f32.mrb[0].mxu0
      %v2429 = vadd.f32 0.0, %v2428
      %v2430 = vpop.f32.mrb[0].mxu0
      %v2431 = vadd.f32 0.0, %v2430
      %v2432 = vpop.f32.mrb[0].mxu0
      %v2433 = vadd.f32 0.0, %v2432
      %2434 = vdwg.mxu0
      %2435 = vst [vmem:[%s521] sm:$0xff] %v2384
      %2436 = vst [vmem:[%s521 + $0x8] sm:$0xff] %v2386
      %2437 = vst [vmem:[%s521 + $0x10] sm:$0xff] %v2427
      %2438 = vst [vmem:[%s521 + $0x18] sm:$0xff] %v2429
      %2439 = vst [vmem:[%s521 + $0x20] sm:$0xff] %v2388
      %2440 = vst [vmem:[%s521 + $0x28] sm:$0xff] %v2390
      %2441 = vst [vmem:[%s521 + $0x30] sm:$0xff] %v2431
      %2442 = vst [vmem:[%s521 + $0x38] sm:$0xff] %v2433
      %p2443 = scmp.lt.s32.totalorder %s27, 1
      %s2444 = scalar_select %p2443, %s27, 1
      %s2445 = smul.addr %s2444, 8
      %s2446 = smul.addr %s2445, 8
      %s2447 = scalar_lea.vmem %s16, %s2446
      // Predicated region
      $region85: #{lora_fft_v2_forward.1} parent=83 // pred_check
        %p2448 = pneg %p386
      $region86: #{lora_fft_v2_forward.1} parent=83 // pred_check_branch
        %2450 = sbr.rel (%p2448) target = $region88
      $region87: #{lora_fft_v2_forward.1} parent=83 // pred_region
        _
      $region88: #{lora_fft_v2_forward.1} parent=83 // pred_fallthru
        _
    $region84: #{lora_fft_v2_forward.1} parent=5 // pred_fallthru
      _
    %p2451 = scmp.le.s32.totalorder 2, %s22
    // Predicated region
    $region89: #{lora_fft_v2_forward.1} parent=5 // pred_check
      %p2452 = pneg %p2451
    $region90: #{lora_fft_v2_forward.1} parent=5 // pred_check_branch
      %2454 = sbr.rel (%p2452) target = $region92
    $region91: #{lora_fft_v2_forward.1} parent=5 // pred_region
      %s2455 = ssub.s32 %s22, 2
      // Predicated region
      $region93: #{lora_fft_v2_forward.1} parent=91 // pred_check
        %p2456 = pneg %p392
      $region94: #{lora_fft_v2_forward.1} parent=91 // pred_check_branch
        %2458 = sbr.rel (%p2456) target = $region96
      $region95: #{lora_fft_v2_forward.1} parent=91 // pred_region
        %p2459 = scmp.lt.s32.totalorder %s28, 1
        %s2460 = scalar_select %p2459, %s28, 1
        %s2461 = smul.addr %s2460, 8
        %s2462 = smul.addr %s2461, 8
        %s2463 = scalar_lea.vmem %s16, %s2462
      $region96: #{lora_fft_v2_forward.1} parent=91 // pred_fallthru
        _
    $region92: #{lora_fft_v2_forward.1} parent=5 // pred_fallthru
      _
  $region6: #{lora_fft_v2_forward.1} parent=0 // loop_footer
    %s26 = sadd.s32 1, %s22
  $region7: #{lora_fft_v2_forward.1} parent=0 // loop_footer_branch
    %21 = sbr.rel target = $region3
  $region8: #{lora_fft_v2_forward.1} parent=0 // loop_exit
    _

</llo_original>
